<compile_context>
chip_gen: v7x
topology: tpu7x:2x2x1
jax: 0.10.0
libtpu: 0.0.40
codegen_flags: <defaults>
</compile_context>

<pallas_src>
import jax
import jax.numpy as jnp
from jax import lax
from jax.experimental import pallas as pl
from jax.experimental.pallas import tpu as pltpu

_NEG_INF = -1e30  # finite "minus infinity" keeps masked / init paths NaN-free


def _round_up(v, m):
    return (v + m - 1) // m * m


def _dattention_partial_kernel(n_ref, x_ref, w1_ref, b1_ref, wa1_ref, ba1_ref,
                               wa2_ref, ba2_ref, m_ref, l_ref, acc_ref):
    """Per (bag, split): online softmax over this split's N tiles.

    Outputs (m, l, acc) are the per-split online-softmax partials; the output
    refs themselves are used as the VMEM-resident accumulators (constant block
    index across the innermost "arbitrary" axis).
    """
    s = pl.program_id(1)                 # split index      ("parallel")
    j = pl.program_id(2)                 # N-tile in split  ("arbitrary", innermost)
    tn = x_ref.shape[0]

    @pl.when(j == 0)
    def _():
        m_ref[...] = jnp.full_like(m_ref, _NEG_INF)
        l_ref[...] = jnp.zeros_like(l_ref)
        acc_ref[...] = jnp.zeros_like(acc_ref)

    # ---- feature = ReLU(x @ W1 + b1) ------------------------------------ (TN, L)
    # x arrives bf16 from HBM; MXU accumulates in f32; bias + ReLU stay bf16
    # (packed VPU on v6e/v7x; on v5e the compiler widens — correct either way).
    feat = jnp.dot(x_ref[...], w1_ref[...], preferred_element_type=jnp.float32)
    feat_bf = jnp.maximum(feat.astype(jnp.bfloat16) + b1_ref[...], 0.0)

    # ---- attention logits, lane-dense (1, TN) ----------------------------
    h = jnp.dot(feat_bf, wa1_ref[...], preferred_element_type=jnp.float32)
    h = jnp.tanh(h + ba1_ref[...])                                       # (TN, D) f32
    # a[0, i] = sum_d wa2[0, d] * h[i, d]  (standard q @ k^T NT-contraction on MXU;
    # kept f32 for softmax-logit accuracy — negligible FLOPs vs the feature matmul)
    a = lax.dot_general(wa2_ref[...], h, (((1,), (1,)), ((), ())),
                        preferred_element_type=jnp.float32)              # (1, TN)
    a = a + ba2_ref[0, 0]

    # Mask padded instances beyond the true bag length.
    global_tile = s * pl.num_programs(2) + j
    idx = global_tile * tn + lax.broadcasted_iota(jnp.int32, a.shape, 1)
    valid = idx < n_ref[0]
    a = jnp.where(valid, a, _NEG_INF)

    # ---- online softmax over this split's tiles ---------------------------
    m_prev = m_ref[...]                                                  # (1, 1)
    m_new = jnp.maximum(m_prev, jnp.max(a, axis=-1, keepdims=True))
    alpha = jnp.exp(m_prev - m_new)
    # re-mask after exp so a fully-padded tile contributes exactly zero
    p = jnp.where(valid, jnp.exp(a - m_new), 0.0)                        # (1, TN)
    l_ref[...] = alpha * l_ref[...] + jnp.sum(p, axis=-1, keepdims=True)
    # Weighted pooling as an MXU matmul: (1, TN) @ (TN, L)
    acc_ref[...] = alpha * acc_ref[...] + jnp.dot(
        p.astype(jnp.bfloat16), feat_bf, preferred_element_type=jnp.float32)
    m_ref[...] = m_new


def _dattention_finalize_kernel(m_ref, l_ref, acc_ref, wf_ref, bf_ref, out_ref):
    """Merge per-split online-softmax partials and apply the final FC (per bag)."""
    m = m_ref[...]                                       # (1, S) f32
    m_g = jnp.max(m, axis=-1, keepdims=True)             # (1, 1)
    scale = jnp.exp(m - m_g)                             # (1, S); exp(-1e30-..) -> 0
    l_g = jnp.sum(l_ref[...] * scale, axis=-1, keepdims=True)            # (1, 1)
    pooled = jnp.dot(scale, acc_ref[...], preferred_element_type=jnp.float32)  # (1, L)
    # approx reciprocal (EUP) — ~1e-3 rel err, well inside test tolerance
    pooled = pooled * pl.reciprocal(l_g, approx=True)
    logits = jnp.dot(pooled.astype(jnp.bfloat16), wf_ref[...],
                     preferred_element_type=jnp.float32)
    out_ref[...] = jnp.maximum(logits + bf_ref[...], 0.0)


def dattention_forward_batched(x_bags, params, *, block_n=2048, n_splits=None):
    """x_bags: (B, N, F) float32 -> (B, OUT) float32.

    Each of the B bags is processed independently (equivalent to B calls of the
    PyTorch module). Grid = (bags, splits, N-tiles); bags/splits are "parallel"
    so weights stay VMEM-resident and (on v7x) both TensorCores get work even
    for a single bag.
    """
    w1, b1, wa1, ba1, wa2, ba2, wf, bf = params
    B, N, F = x_bags.shape
    L, D, OUT = w1.shape[1], wa1.shape[1], wf.shape[1]

    # --- N-tile size: multiple of 16 (bf16 sublane packing); shrink if the
    # per-step VMEM working set would get too large (huge F).
    def working_set(t):
        w_bytes = (F * L + L * D) * 2 + L * 2 + (2 * D + 8) * 4
        x_bytes = 2 * t * F * 2                       # double-buffered bf16 x tile
        act_bytes = t * (L * 4 + L * 2 + D * 4 + 16) + (L + 16) * 4
        return w_bytes + x_bytes + act_bytes

    tn = min(_round_up(block_n, 16), _round_up(N, 16))
    while tn > 256 and working_set(tn) > (20 << 20):
        tn = _round_up(max(256, tn // 2), 16)

    n_tiles = (N + tn - 1) // tn
    if n_splits is None:
        # B == 1 (module-shaped input): split the reduction so v7x's second
        # TensorCore has work; harmless (sequential) on single-core v5e/v6e.
        n_splits = 1 if B >= 2 else 2
    n_splits = max(1, min(int(n_splits), n_tiles))
    n_tiles = _round_up(n_tiles, n_splits)
    tiles_per_split = n_tiles // n_splits
    padded_n = n_tiles * tn

    if padded_n != N:
        x_bags = jnp.pad(x_bags, ((0, 0), (0, padded_n - N), (0, 0)))
    # Stream x in bf16: halves the dominant per-step HBM DMA and removes the
    # per-tile in-kernel cast (VPU passes).
    x_bf = x_bags.astype(jnp.bfloat16)

    w1_bf = w1.astype(jnp.bfloat16)
    b1_bf = jnp.reshape(b1, (1, L)).astype(jnp.bfloat16)
    wa1_bf = wa1.astype(jnp.bfloat16)
    ba1_f = jnp.reshape(ba1, (1, D)).astype(jnp.float32)
    wa2_f = jnp.reshape(wa2, (1, D)).astype(jnp.float32)
    wf_bf = wf.astype(jnp.bfloat16)
    bf_f = jnp.reshape(bf, (1, OUT)).astype(jnp.float32)
    ba2_s = jnp.reshape(ba2, (1, 1)).astype(jnp.float32)
    n_valid = jnp.array([N], dtype=jnp.int32)

    vmem_limit = int(max(8 << 20,
                         min(32 << 20, working_set(tn) * 3 // 2 + (4 << 20))))
    cost = pl.CostEstimate(
        flops=int(B * padded_n * 2 * (F * L + L * D + D + L)),
        transcendentals=int(B * padded_n * (D + 1)),
        bytes_accessed=int(B * padded_n * F * 2 + (F * L + L * D) * 2
                           + B * n_splits * (L + 2) * 4))

    const = lambda b, s, j: (0, 0)
    out_map = lambda b, s, j: (b, s, 0, 0)
    m_p, l_p, acc_p = pl.pallas_call(
        _dattention_partial_kernel,
        out_shape=(jax.ShapeDtypeStruct((B, n_splits, 1, 1), jnp.float32),
                   jax.ShapeDtypeStruct((B, n_splits, 1, 1), jnp.float32),
                   jax.ShapeDtypeStruct((B, n_splits, 1, L), jnp.float32)),
        grid=(B, n_splits, tiles_per_split),
        in_specs=[
            pl.BlockSpec(memory_space=pltpu.SMEM),                    # true bag length
            pl.BlockSpec((None, tn, F),
                         lambda b, s, j: (b, s * tiles_per_split + j, 0)),  # x tile
            pl.BlockSpec((F, L), const),                              # w1  (resident)
            pl.BlockSpec((1, L), const),                              # b1
            pl.BlockSpec((L, D), const),                              # wa1 (resident)
            pl.BlockSpec((1, D), const),                              # ba1
            pl.BlockSpec((1, D), const),                              # wa2 (row)
            pl.BlockSpec(memory_space=pltpu.SMEM),                    # ba2 (scalar)
        ],
        out_specs=(pl.BlockSpec((None, None, 1, 1), out_map),
                   pl.BlockSpec((None, None, 1, 1), out_map),
                   pl.BlockSpec((None, None, 1, L), out_map)),
        compiler_params=pltpu.CompilerParams(
            dimension_semantics=("parallel", "parallel", "arbitrary"),
            vmem_limit_bytes=vmem_limit),
        cost_estimate=cost,
    )(n_valid, x_bf, w1_bf, b1_bf, wa1_bf, ba1_f, wa2_f, ba2_s)

    # --- tiny epilogue: merge split partials + final FC (ReLU(M @ Wf + bf)).
    m2 = jnp.reshape(m_p, (B, 1, n_splits))
    l2 = jnp.reshape(l_p, (B, 1, n_splits))
    acc2 = jnp.reshape(acc_p, (B, n_splits, L))
    out3 = pl.pallas_call(
        _dattention_finalize_kernel,
        out_shape=jax.ShapeDtypeStruct((B, 1, OUT), jnp.float32),
        grid=(B,),
        in_specs=[
            pl.BlockSpec((None, 1, n_splits), lambda b: (b, 0, 0)),
            pl.BlockSpec((None, 1, n_splits), lambda b: (b, 0, 0)),
            pl.BlockSpec((None, n_splits, L), lambda b: (b, 0, 0)),
            pl.BlockSpec((L, OUT), lambda b: (0, 0)),
            pl.BlockSpec((1, OUT), lambda b: (0, 0)),
        ],
        out_specs=pl.BlockSpec((None, 1, OUT), lambda b: (b, 0, 0)),
        compiler_params=pltpu.CompilerParams(dimension_semantics=("parallel",)),
    )(m2, l2, acc2, wf_bf, bf_f)
    return jnp.reshape(out3, (B, OUT))


def dattention_forward(x, params, *, block_n=2048, n_splits=None):
    """x: (1, N, F) float32 (exactly the module's input). Returns (1, OUT)."""
    return dattention_forward_batched(x, params, block_n=block_n, n_splits=n_splits)


def init_params(key, n_features, L, D, out_dim):
    """Deterministic synthetic parameters (weights stored as (in, out), f32 master)."""
    ks = jax.random.split(key, 8)
    scale = 0.05
    w1  = scale * jax.random.normal(ks[0], (n_features, L), jnp.float32)
    b1  = scale * jax.random.normal(ks[1], (1, L), jnp.float32)
    wa1 = scale * jax.random.normal(ks[2], (L, D), jnp.float32)
    ba1 = scale * jax.random.normal(ks[3], (1, D), jnp.float32)
    wa2 = scale * jax.random.normal(ks[4], (1, D), jnp.float32)   # (D->1) weight, as a row
    ba2 = scale * jax.random.normal(ks[5], (1, 1), jnp.float32)
    wf  = scale * jax.random.normal(ks[6], (L, out_dim), jnp.float32)
    bf  = scale * jax.random.normal(ks[7], (1, out_dim), jnp.float32)
    return (w1, b1, wa1, ba1, wa2, ba2, wf, bf)


def reference_forward(x, params):
    """Pure-JAX f32 reference of the PyTorch forward (eval mode)."""
    w1, b1, wa1, ba1, wa2, ba2, wf, bf = params
    x2d = jnp.squeeze(x, axis=0)
    feat = jnp.maximum(x2d @ w1 + b1, 0.0)
    A = jnp.tanh(feat @ wa1 + ba1) @ wa2.T + ba2          # (N, 1)
    A = jax.nn.softmax(A.T, axis=-1)                      # (1, N)
    M = A @ feat                                          # (1, L)
    return jnp.maximum(M @ wf + bf, 0.0)


if __name__ == "__main__":
    # Small shapes consistent with the module: fixed L=512, D=128, K=1;
    # constructor args n_features=256, output_vector_size=128.
    F_IN, L, D, OUT = 256, 512, 128, 128
    key = jax.random.PRNGKey(0)
    kx1, kx2, kp = jax.random.split(key, 3)
    params = init_params(kp, F_IN, L, D, OUT)

    # Case 1: module-shaped input, one bag of N=8 instances (single N tile).
    x1 = jax.random.normal(kx1, (1, 8, F_IN), jnp.float32)
    out1 = jax.block_until_ready(dattention_forward(x1, params))
    ref1 = reference_forward(x1, params)
    assert out1.shape == (1, OUT), out1.shape
    assert jnp.allclose(out1, ref1, atol=3e-2, rtol=3e-2), \
        float(jnp.max(jnp.abs(out1 - ref1)))

    # Case 2: two bags, N=200 with 64-row tiles (multi-tile online softmax,
    # padded-row masking, parallel bag axis, single split).
    B, N2 = 2, 200
    xb = jax.random.normal(kx2, (B, N2, F_IN), jnp.float32)
    outb = jax.block_until_ready(dattention_forward_batched(xb, params, block_n=64))
    refb = jnp.concatenate([reference_forward(xb[b:b + 1], params) for b in range(B)],
                           axis=0)
    assert outb.shape == (B, OUT), outb.shape
    assert jnp.allclose(outb, refb, atol=3e-2, rtol=3e-2), \
        float(jnp.max(jnp.abs(outb - refb)))

    # Case 3: single bag, N=200, 64-row tiles -> exercises the 2-way core-split
    # of the N axis plus the split-merge finalize kernel.
    outs = jax.block_until_ready(dattention_forward_batched(xb[:1], params, block_n=64))
    assert outs.shape == (1, OUT), outs.shape
    assert jnp.allclose(outs, refb[:1], atol=3e-2, rtol=3e-2), \
        float(jnp.max(jnp.abs(outs - refb[:1])))

    print("KERNEL_OK")
</pallas_src>

<mosaic_0001>
module attributes {stable_mosaic.version = 11 : i64} {
  func.func @_dattention_partial_kernel(%arg0: i32, %arg1: i32, %arg2: i32, %arg3: memref<1xi32, #tpu.memory_space<smem>>, %arg4: memref<1x16x256xbf16, #tpu.memory_space<vmem>>, %arg5: memref<256x512xbf16, #tpu.memory_space<vmem>>, %arg6: memref<1x512xbf16, #tpu.memory_space<vmem>>, %arg7: memref<512x128xbf16, #tpu.memory_space<vmem>>, %arg8: memref<1x128xf32, #tpu.memory_space<vmem>>, %arg9: memref<1x128xf32, #tpu.memory_space<vmem>>, %arg10: memref<1x1xf32, #tpu.memory_space<smem>>, %arg11: memref<1x1x1x1xf32, #tpu.memory_space<vmem>>, %arg12: memref<1x1x1x1xf32, #tpu.memory_space<vmem>>, %arg13: memref<1x1x1x512xf32, #tpu.memory_space<vmem>>) attributes {dimension_semantics = [#tpu.dimension_semantics<parallel>, #tpu.dimension_semantics<parallel>, #tpu.dimension_semantics<arbitrary>], iteration_bounds = array<i64: 1, 1, 1>, scalar_prefetch = 0 : i64, scratch_operands = 0 : i64, tpu.core_type = #tpu.core_type<tc>, window_params = [{transform_indices = @transform_0, window_bounds = array<i64: 1>}, {transform_indices = @transform_1, window_bounds = array<i64: 1, 16, 256>}, {pipeline_mode = #tpu.pipeline_mode<synchronous>, transform_indices = @transform_2, window_bounds = array<i64: 256, 512>}, {pipeline_mode = #tpu.pipeline_mode<synchronous>, transform_indices = @transform_3, window_bounds = array<i64: 1, 512>}, {pipeline_mode = #tpu.pipeline_mode<synchronous>, transform_indices = @transform_4, window_bounds = array<i64: 512, 128>}, {pipeline_mode = #tpu.pipeline_mode<synchronous>, transform_indices = @transform_5, window_bounds = array<i64: 1, 128>}, {pipeline_mode = #tpu.pipeline_mode<synchronous>, transform_indices = @transform_6, window_bounds = array<i64: 1, 128>}, {transform_indices = @transform_7, window_bounds = array<i64: 1, 1>}, {transform_indices = @transform_8, window_bounds = array<i64: 1, 1, 1, 1>}, {transform_indices = @transform_9, window_bounds = array<i64: 1, 1, 1, 1>}, {transform_indices = @transform_10, window_bounds = array<i64: 1, 1, 1, 512>}]} {
    %c0_i32 = arith.constant 0 : i32
    %0 = arith.cmpi eq, %arg2, %c0_i32 : i32
    %1 = arith.extui %0 : i1 to i32
    %c0_i32_0 = arith.constant 0 : i32
    %2 = arith.cmpi ne, %1, %c0_i32_0 : i32
    scf.if %2 {
      %cst_48 = arith.constant -1.000000e+30 : f32
      %69 = vector.broadcast %cst_48 : f32 to vector<1x1xf32>
      %c0_49 = arith.constant 0 : index
      %c0_50 = arith.constant 0 : index
      %c0_51 = arith.constant 0 : index
      %c0_52 = arith.constant 0 : index
      %70 = vector.load %arg11[%c0_49, %c0_50, %c0_51, %c0_52] : memref<1x1x1x1xf32, #tpu.memory_space<vmem>>, vector<1x1x1x1xf32>
      %71 = vector.shape_cast %70 : vector<1x1x1x1xf32> to vector<1x1xf32>
      %72 = vector.shape_cast %69 : vector<1x1xf32> to vector<1x1x1x1xf32>
      tpu.vector_store %arg11[%c0_49, %c0_50, %c0_51, %c0_52], %72 {strides = array<i32>} : memref<1x1x1x1xf32, #tpu.memory_space<vmem>>, vector<1x1x1x1xf32>,
      %cst_53 = arith.constant 0.000000e+00 : f32
      %73 = vector.broadcast %cst_53 : f32 to vector<1x1xf32>
      %c0_54 = arith.constant 0 : index
      %c0_55 = arith.constant 0 : index
      %c0_56 = arith.constant 0 : index
      %c0_57 = arith.constant 0 : index
      %74 = vector.load %arg12[%c0_54, %c0_55, %c0_56, %c0_57] : memref<1x1x1x1xf32, #tpu.memory_space<vmem>>, vector<1x1x1x1xf32>
      %75 = vector.shape_cast %74 : vector<1x1x1x1xf32> to vector<1x1xf32>
      %76 = vector.shape_cast %73 : vector<1x1xf32> to vector<1x1x1x1xf32>
      tpu.vector_store %arg12[%c0_54, %c0_55, %c0_56, %c0_57], %76 {strides = array<i32>} : memref<1x1x1x1xf32, #tpu.memory_space<vmem>>, vector<1x1x1x1xf32>,
      %cst_58 = arith.constant 0.000000e+00 : f32
      %77 = vector.broadcast %cst_58 : f32 to vector<1x512xf32>
      %c0_59 = arith.constant 0 : index
      %c0_60 = arith.constant 0 : index
      %c0_61 = arith.constant 0 : index
      %c0_62 = arith.constant 0 : index
      %78 = vector.load %arg13[%c0_59, %c0_60, %c0_61, %c0_62] : memref<1x1x1x512xf32, #tpu.memory_space<vmem>>, vector<1x1x1x512xf32>
      %79 = vector.shape_cast %78 : vector<1x1x1x512xf32> to vector<1x512xf32>
      %80 = vector.shape_cast %77 : vector<1x512xf32> to vector<1x1x1x512xf32>
      tpu.vector_store %arg13[%c0_59, %c0_60, %c0_61, %c0_62], %80 {strides = array<i32>} : memref<1x1x1x512xf32, #tpu.memory_space<vmem>>, vector<1x1x1x512xf32>,
    } else {
    }
    %c0 = arith.constant 0 : index
    %c0_1 = arith.constant 0 : index
    %c0_2 = arith.constant 0 : index
    %3 = vector.load %arg4[%c0, %c0_1, %c0_2] : memref<1x16x256xbf16, #tpu.memory_space<vmem>>, vector<1x16x256xbf16>
    %4 = vector.shape_cast %3 : vector<1x16x256xbf16> to vector<16x256xbf16>
    %c0_3 = arith.constant 0 : index
    %c0_4 = arith.constant 0 : index
    %5 = vector.load %arg5[%c0_3, %c0_4] : memref<256x512xbf16, #tpu.memory_space<vmem>>, vector<256x512xbf16>
    %cst = arith.constant dense<0.000000e+00> : vector<16x512xf32>
    %6 = tpu.matmul %4, %5, %cst {dimension_numbers = #tpu.dot_dimension_numbers<[1], [0], [0], [1], [0, 0, 1, 1], [], []>} : vector<16x256xbf16>, vector<256x512xbf16>, vector<16x512xf32> -> vector<16x512xf32>
    %7 = arith.truncf %6 : vector<16x512xf32> to vector<16x512xbf16>
    %c0_5 = arith.constant 0 : index
    %c0_6 = arith.constant 0 : index
    %8 = vector.load %arg6[%c0_5, %c0_6] : memref<1x512xbf16, #tpu.memory_space<vmem>>, vector<1x512xbf16>
    %9 = vector.broadcast %8 : vector<1x512xbf16> to vector<16x512xbf16>
    %10 = arith.addf %7, %9 : vector<16x512xbf16>
    %cst_7 = arith.constant 0.000000e+00 : bf16
    %11 = vector.broadcast %cst_7 : bf16 to vector<16x512xbf16>
    %12 = arith.maximumf %10, %11 : vector<16x512xbf16>
    %c0_8 = arith.constant 0 : index
    %c0_9 = arith.constant 0 : index
    %13 = vector.load %arg7[%c0_8, %c0_9] : memref<512x128xbf16, #tpu.memory_space<vmem>>, vector<512x128xbf16>
    %cst_10 = arith.constant dense<0.000000e+00> : vector<16x128xf32>
    %14 = tpu.matmul %12, %13, %cst_10 {dimension_numbers = #tpu.dot_dimension_numbers<[1], [0], [0], [1], [0, 0, 1, 1], [], []>} : vector<16x512xbf16>, vector<512x128xbf16>, vector<16x128xf32> -> vector<16x128xf32>
    %c0_11 = arith.constant 0 : index
    %c0_12 = arith.constant 0 : index
    %15 = vector.load %arg8[%c0_11, %c0_12] : memref<1x128xf32, #tpu.memory_space<vmem>>, vector<1x128xf32>
    %16 = vector.broadcast %15 : vector<1x128xf32> to vector<16x128xf32>
    %17 = arith.addf %14, %16 : vector<16x128xf32>
    %18 = math.tanh %17 : vector<16x128xf32>
    %c0_13 = arith.constant 0 : index
    %c0_14 = arith.constant 0 : index
    %19 = vector.load %arg9[%c0_13, %c0_14] : memref<1x128xf32, #tpu.memory_space<vmem>>, vector<1x128xf32>
    %cst_15 = arith.constant dense<0.000000e+00> : vector<1x16xf32>
    %20 = tpu.matmul %19, %18, %cst_15 {dimension_numbers = #tpu.dot_dimension_numbers<[1], [1], [0], [0], [0, 0, 1, 0], [], []>} : vector<1x128xf32>, vector<16x128xf32>, vector<1x16xf32> -> vector<1x16xf32>
    %c0_16 = arith.constant 0 : index
    %c0_17 = arith.constant 0 : index
    %21 = memref.load %arg10[%c0_16, %c0_17] : memref<1x1xf32, #tpu.memory_space<smem>>
    %22 = vector.broadcast %21 : f32 to vector<1x16xf32>
    %23 = arith.addf %20, %22 : vector<1x16xf32>
    %c1_i32 = arith.constant 1 : i32
    %24 = arith.muli %arg1, %c1_i32 : i32
    %25 = arith.addi %24, %arg2 : i32
    %c16_i32 = arith.constant 16 : i32
    %26 = arith.muli %25, %c16_i32 : i32
    %27 = tpu.iota {dimensions = array<i32: 1>} : vector<1x16xi32>
    %28 = vector.broadcast %26 : i32 to vector<1x16xi32>
    %29 = arith.addi %28, %27 : vector<1x16xi32>
    %c0_18 = arith.constant 0 : index
    %30 = memref.load %arg3[%c0_18] : memref<1xi32, #tpu.memory_space<smem>>
    %31 = vector.broadcast %30 : i32 to vector<1x16xi32>
    %32 = arith.cmpi slt, %29, %31 : vector<1x16xi32>
    %cst_19 = arith.constant -1.000000e+30 : f32
    %33 = vector.broadcast %cst_19 : f32 to vector<1x16xf32>
    %34 = arith.select %32, %23, %33 : vector<1x16xi1>, vector<1x16xf32>
    %c0_20 = arith.constant 0 : index
    %c0_21 = arith.constant 0 : index
    %c0_22 = arith.constant 0 : index
    %c0_23 = arith.constant 0 : index
    %35 = vector.load %arg11[%c0_20, %c0_21, %c0_22, %c0_23] : memref<1x1x1x1xf32, #tpu.memory_space<vmem>>, vector<1x1x1x1xf32>
    %36 = vector.shape_cast %35 : vector<1x1x1x1xf32> to vector<1x1xf32>
    %cst_24 = arith.constant dense<0xFF800000> : vector<1xf32>
    %37 = vector.multi_reduction <maximumf>, %34, %cst_24 [1] : vector<1x16xf32> to vector<1xf32>
    %38 = vector.shape_cast %37 : vector<1xf32> to vector<1x1xf32>
    %39 = arith.maximumf %36, %38 : vector<1x1xf32>
    %40 = arith.subf %36, %39 : vector<1x1xf32>
    %41 = math.exp %40 : vector<1x1xf32>
    %42 = vector.broadcast %39 : vector<1x1xf32> to vector<1x16xf32>
    %43 = arith.subf %34, %42 : vector<1x16xf32>
    %44 = math.exp %43 : vector<1x16xf32>
    %cst_25 = arith.constant 0.000000e+00 : f32
    %45 = vector.broadcast %cst_25 : f32 to vector<1x16xf32>
    %46 = arith.select %32, %44, %45 : vector<1x16xi1>, vector<1x16xf32>
    %c0_26 = arith.constant 0 : index
    %c0_27 = arith.constant 0 : index
    %c0_28 = arith.constant 0 : index
    %c0_29 = arith.constant 0 : index
    %47 = vector.load %arg12[%c0_26, %c0_27, %c0_28, %c0_29] : memref<1x1x1x1xf32, #tpu.memory_space<vmem>>, vector<1x1x1x1xf32>
    %48 = vector.shape_cast %47 : vector<1x1x1x1xf32> to vector<1x1xf32>
    %49 = arith.mulf %41, %48 : vector<1x1xf32>
    %cst_30 = arith.constant dense<0.000000e+00> : vector<1xf32>
    %50 = vector.multi_reduction <add>, %46, %cst_30 [1] : vector<1x16xf32> to vector<1xf32>
    %51 = vector.shape_cast %50 : vector<1xf32> to vector<1x1xf32>
    %52 = arith.addf %49, %51 : vector<1x1xf32>
    %c0_31 = arith.constant 0 : index
    %c0_32 = arith.constant 0 : index
    %c0_33 = arith.constant 0 : index
    %c0_34 = arith.constant 0 : index
    %53 = vector.load %arg12[%c0_31, %c0_32, %c0_33, %c0_34] : memref<1x1x1x1xf32, #tpu.memory_space<vmem>>, vector<1x1x1x1xf32>
    %54 = vector.shape_cast %53 : vector<1x1x1x1xf32> to vector<1x1xf32>
    %55 = vector.shape_cast %52 : vector<1x1xf32> to vector<1x1x1x1xf32>
    tpu.vector_store %arg12[%c0_31, %c0_32, %c0_33, %c0_34], %55 {strides = array<i32>} : memref<1x1x1x1xf32, #tpu.memory_space<vmem>>, vector<1x1x1x1xf32>,
    %c0_35 = arith.constant 0 : index
    %c0_36 = arith.constant 0 : index
    %c0_37 = arith.constant 0 : index
    %c0_38 = arith.constant 0 : index
    %56 = vector.load %arg13[%c0_35, %c0_36, %c0_37, %c0_38] : memref<1x1x1x512xf32, #tpu.memory_space<vmem>>, vector<1x1x1x512xf32>
    %57 = vector.shape_cast %56 : vector<1x1x1x512xf32> to vector<1x512xf32>
    %58 = vector.broadcast %41 : vector<1x1xf32> to vector<1x512xf32>
    %59 = arith.mulf %58, %57 : vector<1x512xf32>
    %60 = arith.truncf %46 : vector<1x16xf32> to vector<1x16xbf16>
    %cst_39 = arith.constant dense<0.000000e+00> : vector<1x512xf32>
    %61 = tpu.matmul %60, %12, %cst_39 {dimension_numbers = #tpu.dot_dimension_numbers<[1], [0], [0], [1], [0, 0, 1, 1], [], []>} : vector<1x16xbf16>, vector<16x512xbf16>, vector<1x512xf32> -> vector<1x512xf32>
    %62 = arith.addf %59, %61 : vector<1x512xf32>
    %c0_40 = arith.constant 0 : index
    %c0_41 = arith.constant 0 : index
    %c0_42 = arith.constant 0 : index
    %c0_43 = arith.constant 0 : index
    %63 = vector.load %arg13[%c0_40, %c0_41, %c0_42, %c0_43] : memref<1x1x1x512xf32, #tpu.memory_space<vmem>>, vector<1x1x1x512xf32>
    %64 = vector.shape_cast %63 : vector<1x1x1x512xf32> to vector<1x512xf32>
    %65 = vector.shape_cast %62 : vector<1x512xf32> to vector<1x1x1x512xf32>
    tpu.vector_store %arg13[%c0_40, %c0_41, %c0_42, %c0_43], %65 {strides = array<i32>} : memref<1x1x1x512xf32, #tpu.memory_space<vmem>>, vector<1x1x1x512xf32>,
    %c0_44 = arith.constant 0 : index
    %c0_45 = arith.constant 0 : index
    %c0_46 = arith.constant 0 : index
    %c0_47 = arith.constant 0 : index
    %66 = vector.load %arg11[%c0_44, %c0_45, %c0_46, %c0_47] : memref<1x1x1x1xf32, #tpu.memory_space<vmem>>, vector<1x1x1x1xf32>
    %67 = vector.shape_cast %66 : vector<1x1x1x1xf32> to vector<1x1xf32>
    %68 = vector.shape_cast %39 : vector<1x1xf32> to vector<1x1x1x1xf32>
    tpu.vector_store %arg11[%c0_44, %c0_45, %c0_46, %c0_47], %68 {strides = array<i32>} : memref<1x1x1x1xf32, #tpu.memory_space<vmem>>, vector<1x1x1x1xf32>,
    return
  }
  func.func @transform_0(%arg0: i32, %arg1: i32, %arg2: i32) -> i32 {
    %c0_i32 = arith.constant 0 : i32
    %c0_i32_0 = arith.constant 0 : i32
    return %c0_i32 : i32
  }
  func.func @transform_1(%arg0: i32, %arg1: i32, %arg2: i32) -> (i32, i32, i32) {
    %c1_i32 = arith.constant 1 : i32
    %0 = arith.muli %arg1, %c1_i32 : i32
    %1 = arith.addi %0, %arg2 : i32
    %c0_i32 = arith.constant 0 : i32
    %c0_i32_0 = arith.constant 0 : i32
    return %arg0, %1, %c0_i32 : i32, i32, i32
  }
  func.func @transform_2(%arg0: i32, %arg1: i32, %arg2: i32) -> (i32, i32) {
    %c0_i32 = arith.constant 0 : i32
    %c0_i32_0 = arith.constant 0 : i32
    %c0_i32_1 = arith.constant 0 : i32
    return %c0_i32, %c0_i32_0 : i32, i32
  }
  func.func @transform_3(%arg0: i32, %arg1: i32, %arg2: i32) -> (i32, i32) {
    %c0_i32 = arith.constant 0 : i32
    %c0_i32_0 = arith.constant 0 : i32
    %c0_i32_1 = arith.constant 0 : i32
    return %c0_i32, %c0_i32_0 : i32, i32
  }
  func.func @transform_4(%arg0: i32, %arg1: i32, %arg2: i32) -> (i32, i32) {
    %c0_i32 = arith.constant 0 : i32
    %c0_i32_0 = arith.constant 0 : i32
    %c0_i32_1 = arith.constant 0 : i32
    return %c0_i32, %c0_i32_0 : i32, i32
  }
  func.func @transform_5(%arg0: i32, %arg1: i32, %arg2: i32) -> (i32, i32) {
    %c0_i32 = arith.constant 0 : i32
    %c0_i32_0 = arith.constant 0 : i32
    %c0_i32_1 = arith.constant 0 : i32
    return %c0_i32, %c0_i32_0 : i32, i32
  }
  func.func @transform_6(%arg0: i32, %arg1: i32, %arg2: i32) -> (i32, i32) {
    %c0_i32 = arith.constant 0 : i32
    %c0_i32_0 = arith.constant 0 : i32
    %c0_i32_1 = arith.constant 0 : i32
    return %c0_i32, %c0_i32_0 : i32, i32
  }
  func.func @transform_7(%arg0: i32, %arg1: i32, %arg2: i32) -> (i32, i32) {
    %c0_i32 = arith.constant 0 : i32
    %c0_i32_0 = arith.constant 0 : i32
    %c0_i32_1 = arith.constant 0 : i32
    return %c0_i32, %c0_i32_0 : i32, i32
  }
  func.func @transform_8(%arg0: i32, %arg1: i32, %arg2: i32) -> (i32, i32, i32, i32) {
    %c0_i32 = arith.constant 0 : i32
    %c0_i32_0 = arith.constant 0 : i32
    %c0_i32_1 = arith.constant 0 : i32
    return %arg0, %arg1, %c0_i32, %c0_i32_0 : i32, i32, i32, i32
  }
  func.func @transform_9(%arg0: i32, %arg1: i32, %arg2: i32) -> (i32, i32, i32, i32) {
    %c0_i32 = arith.constant 0 : i32
    %c0_i32_0 = arith.constant 0 : i32
    %c0_i32_1 = arith.constant 0 : i32
    return %arg0, %arg1, %c0_i32, %c0_i32_0 : i32, i32, i32, i32
  }
  func.func @transform_10(%arg0: i32, %arg1: i32, %arg2: i32) -> (i32, i32, i32, i32) {
    %c0_i32 = arith.constant 0 : i32
    %c0_i32_0 = arith.constant 0 : i32
    %c0_i32_1 = arith.constant 0 : i32
    return %arg0, %arg1, %c0_i32, %c0_i32_0 : i32, i32, i32, i32
  }
}

</mosaic_0001>

<llo_original>
// kernel: tpu_custom_call.1
$region0: #{tpu_custom_call.1}
  #allocation0 [shape = 'u32[]', space=smem, size = 0x4, offset = 0x4, fixed_abs, tag = 'smem constant byte address 0x4 - core index']
  #allocation1 [shape = 'u32[144,128]{1,0:T(1,128)}', space=vmem, size = 0x12000, scoped, tag = 'internal scratch']
  #allocation2 [shape = 's32[1]{0:T(128)S(6)}', space=smem, size = 0x200, scoped, tag = 'scoped memory for tpu_custom_call.1']
  #allocation3 [shape = 'f32[1,1]{1,0:T(1,128)S(6)}', space=smem, size = 0x200, scoped, tag = 'scoped memory for tpu_custom_call.1']
  %s0 = inlined_call_operand.<no memory space> [shape: s32[1], index: 0, kind: input, shape index: {}]
  %s1 = inlined_call_operand.hbm [shape: bf16[1,16,256], index: 1, kind: input, shape index: {}]
  %s2 = inlined_call_operand.hbm [shape: bf16[256,512], index: 2, kind: input, shape index: {}]
  %s3 = inlined_call_operand.vmem [shape: bf16[1,512], index: 3, kind: input, shape index: {}]
  %s4 = inlined_call_operand.hbm [shape: bf16[512,128], index: 4, kind: input, shape index: {}]
  %s5 = inlined_call_operand.vmem [shape: f32[1,128], index: 5, kind: input, shape index: {}]
  %s6 = inlined_call_operand.vmem [shape: f32[1,128], index: 6, kind: input, shape index: {}]
  %s7 = inlined_call_operand.<no memory space> [shape: f32[1,1], index: 7, kind: input, shape index: {}]
  %s8 = inlined_call_operand.hbm [shape: f32[1,1,1,1], index: 8, kind: output, shape index: {0}]
  %s9 = inlined_call_operand.hbm [shape: f32[1,1,1,1], index: 9, kind: output, shape index: {1}]
  %s10 = inlined_call_operand.hbm [shape: f32[1,1,1,512], index: 10, kind: output, shape index: {2}]
  %11 = xla_tuple %s8, %s9, %s10
  %s12 = sld [smem:[#allocation0]]
  $region74: #{tpu_custom_call.1} parent=0
    _
  %s14 = ssub.s32 1, %s12
  %s15 = scalar_select 0, %s14, %s12
  %16 = sst [smem:[#allocation2]] %s0
  %17 = sst [smem:[#allocation3]] %s7
  $region1: #{tpu_custom_call.1} parent=0
    #allocation4 [shape = 'u8[8192]{0}', space=vmem, size = 0x2000, scoped, tag = 'input window, operand 1, single buffered']
    #allocation5 [shape = 's32[1]{0}', space=sflag, size = 0x4, scoped, tag = 'scoped memory for tpu_custom_call.1']
    #allocation6 [shape = 's32[1]{0}', space=sflag, size = 0x4, scoped, tag = 'scoped memory for tpu_custom_call.1']
    #allocation7 [shape = 'u8[262144]{0}', space=vmem, size = 0x40000, scoped, tag = 'input window, operand 2, single buffered']
    #allocation8 [shape = 's32[1]{0}', space=sflag, size = 0x4, scoped, tag = 'scoped memory for tpu_custom_call.1']
    #allocation9 [shape = 'u8[131072]{0}', space=vmem, size = 0x20000, scoped, tag = 'input window, operand 4, single buffered']
    #allocation10 [shape = 'u8[512]{0}', space=vmem, size = 0x400, scoped, tag = 'output window, operand 0, single buffered']
    #allocation11 [shape = 'u8[512]{0}', space=vmem, size = 0x400, scoped, tag = 'output window, operand 1, single buffered']
    #allocation12 [shape = 's32[1]{0}', space=sflag, size = 0x4, scoped, tag = 'scoped memory for tpu_custom_call.1']
    #allocation13 [shape = 'u8[2048]{0}', space=vmem, size = 0x800, scoped, tag = 'output window, operand 2, single buffered']
    %18 = vsyncpa [#allocation5], 0
    %19 = vsyncpa [#allocation8], 0
    %20 = vsyncpa [#allocation6], 0
    %21 = vsyncpa [#allocation12], 0
    // Predicated region
    $region2: #{tpu_custom_call.1} parent=1 // pred_check
      _
    $region3: #{tpu_custom_call.1} parent=1 // pred_check_branch
      %23 = sbr.rel (0) target = $region5
    $region4: #{tpu_custom_call.1} parent=1 // pred_region
      _
    $region5: #{tpu_custom_call.1} parent=1 // pred_fallthru
      _
    // Predicated region
    $region6: #{tpu_custom_call.1} parent=1 // pred_check
      _
    $region7: #{tpu_custom_call.1} parent=1 // pred_check_branch
      %25 = sbr.rel (0) target = $region9
    $region8: #{tpu_custom_call.1} parent=1 // pred_region
      %s26 = sadd.s32 0, 0
      %s27 = smul.u32 2, %s26
      %s29 = ssub.s32 256, 256
      %30 = vsyncadd [#allocation5], %s29
      %s31 = smul.addr %s27, 2
      %s32 = smul.addr %s31, 64
      %s33 = scalar_lea.hbm %s1, %s32
      %s34 = sshll.u32 [#allocation4], 4
      %s35 = int_to_ptr.vmem [resolvable:$true] %s34
      %40 = dma.hbm_to_vmem [thread:$0]  %s33, 256, %s35, [#allocation5], 128, 128, 8
    $region9: #{tpu_custom_call.1} parent=1 // pred_fallthru
      _
    // Predicated region
    $region10: #{tpu_custom_call.1} parent=1 // pred_check
      _
    $region11: #{tpu_custom_call.1} parent=1 // pred_check_branch
      %42 = sbr.rel (0) target = $region13
    $region12: #{tpu_custom_call.1} parent=1 // pred_region
      %s44 = ssub.s32 8192, 8192
      %45 = vsyncadd [#allocation8], %s44
      %s46 = sshll.u32 [#allocation7], 4
      %s47 = int_to_ptr.vmem [resolvable:$true] %s46
      %52 = dma.hbm_to_vmem [thread:$0]  %s2, 8192, %s47, [#allocation8], 256, 256, 16
    $region13: #{tpu_custom_call.1} parent=1 // pred_fallthru
      _
    // Predicated region
    $region14: #{tpu_custom_call.1} parent=1 // pred_check
      _
    $region15: #{tpu_custom_call.1} parent=1 // pred_check_branch
      %54 = sbr.rel (0) target = $region17
    $region16: #{tpu_custom_call.1} parent=1 // pred_region
      _
    $region17: #{tpu_custom_call.1} parent=1 // pred_fallthru
      _
    // Predicated region
    $region18: #{tpu_custom_call.1} parent=1 // pred_check
      _
    $region19: #{tpu_custom_call.1} parent=1 // pred_check_branch
      %56 = sbr.rel (0) target = $region21
    $region20: #{tpu_custom_call.1} parent=1 // pred_region
      %s58 = ssub.s32 4096, 4096
      %59 = vsyncadd [#allocation8], %s58
      %s60 = sshll.u32 [#allocation9], 4
      %s61 = int_to_ptr.vmem [resolvable:$true] %s60
      %66 = dma.hbm_to_vmem [thread:$0]  %s4, 4096, %s61, [#allocation8], 64, 64, 4
    $region21: #{tpu_custom_call.1} parent=1 // pred_fallthru
      _
    // Predicated region
    $region22: #{tpu_custom_call.1} parent=1 // pred_check
      _
    $region23: #{tpu_custom_call.1} parent=1 // pred_check_branch
      %68 = sbr.rel (0) target = $region25
    $region24: #{tpu_custom_call.1} parent=1 // pred_region
      _
    $region25: #{tpu_custom_call.1} parent=1 // pred_fallthru
      _
    // Predicated region
    $region26: #{tpu_custom_call.1} parent=1 // pred_check
      _
    $region27: #{tpu_custom_call.1} parent=1 // pred_check_branch
      %70 = sbr.rel (0) target = $region29
    $region28: #{tpu_custom_call.1} parent=1 // pred_region
      _
    $region29: #{tpu_custom_call.1} parent=1 // pred_fallthru
      _
    // Predicated region
    $region30: #{tpu_custom_call.1} parent=1 // pred_check
      _
    $region31: #{tpu_custom_call.1} parent=1 // pred_check_branch
      %72 = sbr.rel (0) target = $region33
    $region32: #{tpu_custom_call.1} parent=1 // pred_region
      _
    $region33: #{tpu_custom_call.1} parent=1 // pred_fallthru
      _
    // Predicated region
    $region34: #{tpu_custom_call.1} parent=1 // pred_check
      _
    $region35: #{tpu_custom_call.1} parent=1 // pred_check_branch
      %74 = sbr.rel (0) target = $region37
    $region36: #{tpu_custom_call.1} parent=1 // pred_region
      %75 = dma.done [#allocation5], 256
    $region37: #{tpu_custom_call.1} parent=1 // pred_fallthru
      _
    // Predicated region
    $region38: #{tpu_custom_call.1} parent=1 // pred_check
      _
    $region39: #{tpu_custom_call.1} parent=1 // pred_check_branch
      %77 = sbr.rel (0) target = $region41
    $region40: #{tpu_custom_call.1} parent=1 // pred_region
      %78 = dma.done [#allocation8], 8192
    $region41: #{tpu_custom_call.1} parent=1 // pred_fallthru
      _
    // Predicated region
    $region42: #{tpu_custom_call.1} parent=1 // pred_check
      _
    $region43: #{tpu_custom_call.1} parent=1 // pred_check_branch
      %80 = sbr.rel (0) target = $region45
    $region44: #{tpu_custom_call.1} parent=1 // pred_region
      %81 = dma.done [#allocation8], 4096
    $region45: #{tpu_custom_call.1} parent=1 // pred_fallthru
      _
    %s82 = sadd.s32 0, 0
    %s83 = smul.u32 2, %s82
    %p85 = scmp.eq.s32.totalorder 0, 0
    // Predicated region
    $region46: #{tpu_custom_call.1} parent=1 // pred_check
      %p86 = pneg %p85
    $region47: #{tpu_custom_call.1} parent=1 // pred_check_branch
      %88 = sbr.rel (%p86) target = $region49
    $region48: #{tpu_custom_call.1} parent=1 // pred_region
      %vm89 = vcmask 0
      %90 = vst.msk [vmem:[#allocation10] sm:$0x1] %vm89, -1e+30
      %91 = vst.msk [vmem:[#allocation11] sm:$0x1] %vm89, 0.0
      %v92 = vlaneseq
      %vm93 = vcmp.ge.s32.totalorder %v92, 0
      %vm94 = vcmp.lt.s32.totalorder %v92, 512
      %vm95 = vmand %vm93, %vm94
      %96 = vst.msk [vmem:[#allocation13] sm:$0xf] %vm95, 0.0
    $region49: #{tpu_custom_call.1} parent=1 // pred_fallthru
      _
    %v97 = vld [vmem:[#allocation4] sm:$0xff]
    %v98 = vld [vmem:[#allocation4 + $0x8] sm:$0xff]
    %v99 = vld [vmem:[#allocation7] sm:$0xff]
    %v100 = vld [vmem:[#allocation7 + $0x8] sm:$0xff]
    %v101 = vld [vmem:[#allocation7 + $0x10] sm:$0xff]
    %v102 = vld [vmem:[#allocation7 + $0x18] sm:$0xff]
    %v103 = vld [vmem:[#allocation7 + $0x20] sm:$0xff]
    %v104 = vld [vmem:[#allocation7 + $0x28] sm:$0xff]
    %v105 = vld [vmem:[#allocation7 + $0x30] sm:$0xff]
    %v106 = vld [vmem:[#allocation7 + $0x38] sm:$0xff]
    %v107 = vld [vmem:[#allocation7 + $0x40] sm:$0xff]
    %v108 = vld [vmem:[#allocation7 + $0x48] sm:$0xff]
    %v109 = vld [vmem:[#allocation7 + $0x50] sm:$0xff]
    %v110 = vld [vmem:[#allocation7 + $0x58] sm:$0xff]
    %v111 = vld [vmem:[#allocation7 + $0x60] sm:$0xff]
    %v112 = vld [vmem:[#allocation7 + $0x68] sm:$0xff]
    %v113 = vld [vmem:[#allocation7 + $0x70] sm:$0xff]
    %v114 = vld [vmem:[#allocation7 + $0x78] sm:$0xff]
    %v115 = vld [vmem:[#allocation7 + $0x80] sm:$0xff]
    %v116 = vld [vmem:[#allocation7 + $0x88] sm:$0xff]
    %v117 = vld [vmem:[#allocation7 + $0x90] sm:$0xff]
    %v118 = vld [vmem:[#allocation7 + $0x98] sm:$0xff]
    %v119 = vld [vmem:[#allocation7 + $0xa0] sm:$0xff]
    %v120 = vld [vmem:[#allocation7 + $0xa8] sm:$0xff]
    %v121 = vld [vmem:[#allocation7 + $0xb0] sm:$0xff]
    %v122 = vld [vmem:[#allocation7 + $0xb8] sm:$0xff]
    %v123 = vld [vmem:[#allocation7 + $0xc0] sm:$0xff]
    %v124 = vld [vmem:[#allocation7 + $0xc8] sm:$0xff]
    %v125 = vld [vmem:[#allocation7 + $0xd0] sm:$0xff]
    %v126 = vld [vmem:[#allocation7 + $0xd8] sm:$0xff]
    %v127 = vld [vmem:[#allocation7 + $0xe0] sm:$0xff]
    %v128 = vld [vmem:[#allocation7 + $0xe8] sm:$0xff]
    %v129 = vld [vmem:[#allocation7 + $0xf0] sm:$0xff]
    %v130 = vld [vmem:[#allocation7 + $0xf8] sm:$0xff]
    %v131 = vld [vmem:[#allocation7 + $0x100] sm:$0xff]
    %v132 = vld [vmem:[#allocation7 + $0x108] sm:$0xff]
    %v133 = vld [vmem:[#allocation7 + $0x110] sm:$0xff]
    %v134 = vld [vmem:[#allocation7 + $0x118] sm:$0xff]
    %v135 = vld [vmem:[#allocation7 + $0x120] sm:$0xff]
    %v136 = vld [vmem:[#allocation7 + $0x128] sm:$0xff]
    %v137 = vld [vmem:[#allocation7 + $0x130] sm:$0xff]
    %v138 = vld [vmem:[#allocation7 + $0x138] sm:$0xff]
    %v139 = vld [vmem:[#allocation7 + $0x140] sm:$0xff]
    %v140 = vld [vmem:[#allocation7 + $0x148] sm:$0xff]
    %v141 = vld [vmem:[#allocation7 + $0x150] sm:$0xff]
    %v142 = vld [vmem:[#allocation7 + $0x158] sm:$0xff]
    %v143 = vld [vmem:[#allocation7 + $0x160] sm:$0xff]
    %v144 = vld [vmem:[#allocation7 + $0x168] sm:$0xff]
    %v145 = vld [vmem:[#allocation7 + $0x170] sm:$0xff]
    %v146 = vld [vmem:[#allocation7 + $0x178] sm:$0xff]
    %v147 = vld [vmem:[#allocation7 + $0x180] sm:$0xff]
    %v148 = vld [vmem:[#allocation7 + $0x188] sm:$0xff]
    %v149 = vld [vmem:[#allocation7 + $0x190] sm:$0xff]
    %v150 = vld [vmem:[#allocation7 + $0x198] sm:$0xff]
    %v151 = vld [vmem:[#allocation7 + $0x1a0] sm:$0xff]
    %v152 = vld [vmem:[#allocation7 + $0x1a8] sm:$0xff]
    %v153 = vld [vmem:[#allocation7 + $0x1b0] sm:$0xff]
    %v154 = vld [vmem:[#allocation7 + $0x1b8] sm:$0xff]
    %v155 = vld [vmem:[#allocation7 + $0x1c0] sm:$0xff]
    %v156 = vld [vmem:[#allocation7 + $0x1c8] sm:$0xff]
    %v157 = vld [vmem:[#allocation7 + $0x1d0] sm:$0xff]
    %v158 = vld [vmem:[#allocation7 + $0x1d8] sm:$0xff]
    %v159 = vld [vmem:[#allocation7 + $0x1e0] sm:$0xff]
    %v160 = vld [vmem:[#allocation7 + $0x1e8] sm:$0xff]
    %v161 = vld [vmem:[#allocation7 + $0x1f0] sm:$0xff]
    %v162 = vld [vmem:[#allocation7 + $0x1f8] sm:$0xff]
    %v165 = vunpack.c.l.b16 %v97
    %v166 = vunpack.c.h.b16 %v97
    %v167 = vunpack.c.l.b16 %v98
    %v168 = vunpack.c.h.b16 %v98
    %v169 = vpack.c.b16 %v167, %v165
    %v170 = vpack.c.b16 %v168, %v166
    %v237 = vunpack.c.l.b16 %v99
    %v238 = vunpack.c.h.b16 %v99
    %v239 = vunpack.c.l.b16 %v100
    %v240 = vunpack.c.h.b16 %v100
    %v241 = vunpack.c.l.b16 %v101
    %v242 = vunpack.c.h.b16 %v101
    %v243 = vunpack.c.l.b16 %v102
    %v244 = vunpack.c.h.b16 %v102
    %v245 = vunpack.c.l.b16 %v103
    %v246 = vunpack.c.h.b16 %v103
    %v247 = vunpack.c.l.b16 %v104
    %v248 = vunpack.c.h.b16 %v104
    %v249 = vunpack.c.l.b16 %v105
    %v250 = vunpack.c.h.b16 %v105
    %v251 = vunpack.c.l.b16 %v106
    %v252 = vunpack.c.h.b16 %v106
    %v253 = vunpack.c.l.b16 %v107
    %v254 = vunpack.c.h.b16 %v107
    %v255 = vunpack.c.l.b16 %v108
    %v256 = vunpack.c.h.b16 %v108
    %v257 = vunpack.c.l.b16 %v109
    %v258 = vunpack.c.h.b16 %v109
    %v259 = vunpack.c.l.b16 %v110
    %v260 = vunpack.c.h.b16 %v110
    %v261 = vunpack.c.l.b16 %v111
    %v262 = vunpack.c.h.b16 %v111
    %v263 = vunpack.c.l.b16 %v112
    %v264 = vunpack.c.h.b16 %v112
    %v265 = vunpack.c.l.b16 %v113
    %v266 = vunpack.c.h.b16 %v113
    %v267 = vunpack.c.l.b16 %v114
    %v268 = vunpack.c.h.b16 %v114
    %v269 = vunpack.c.l.b16 %v115
    %v270 = vunpack.c.h.b16 %v115
    %v271 = vunpack.c.l.b16 %v116
    %v272 = vunpack.c.h.b16 %v116
    %v273 = vunpack.c.l.b16 %v117
    %v274 = vunpack.c.h.b16 %v117
    %v275 = vunpack.c.l.b16 %v118
    %v276 = vunpack.c.h.b16 %v118
    %v277 = vunpack.c.l.b16 %v119
    %v278 = vunpack.c.h.b16 %v119
    %v279 = vunpack.c.l.b16 %v120
    %v280 = vunpack.c.h.b16 %v120
    %v281 = vunpack.c.l.b16 %v121
    %v282 = vunpack.c.h.b16 %v121
    %v283 = vunpack.c.l.b16 %v122
    %v284 = vunpack.c.h.b16 %v122
    %v285 = vunpack.c.l.b16 %v123
    %v286 = vunpack.c.h.b16 %v123
    %v287 = vunpack.c.l.b16 %v124
    %v288 = vunpack.c.h.b16 %v124
    %v289 = vunpack.c.l.b16 %v125
    %v290 = vunpack.c.h.b16 %v125
    %v291 = vunpack.c.l.b16 %v126
    %v292 = vunpack.c.h.b16 %v126
    %v293 = vunpack.c.l.b16 %v127
    %v294 = vunpack.c.h.b16 %v127
    %v295 = vunpack.c.l.b16 %v128
    %v296 = vunpack.c.h.b16 %v128
    %v297 = vunpack.c.l.b16 %v129
    %v298 = vunpack.c.h.b16 %v129
    %v299 = vunpack.c.l.b16 %v130
    %v300 = vunpack.c.h.b16 %v130
    %v301 = vunpack.c.l.b16 %v131
    %v302 = vunpack.c.h.b16 %v131
    %v303 = vunpack.c.l.b16 %v132
    %v304 = vunpack.c.h.b16 %v132
    %v305 = vunpack.c.l.b16 %v133
    %v306 = vunpack.c.h.b16 %v133
    %v307 = vunpack.c.l.b16 %v134
    %v308 = vunpack.c.h.b16 %v134
    %v309 = vunpack.c.l.b16 %v135
    %v310 = vunpack.c.h.b16 %v135
    %v311 = vunpack.c.l.b16 %v136
    %v312 = vunpack.c.h.b16 %v136
    %v313 = vunpack.c.l.b16 %v137
    %v314 = vunpack.c.h.b16 %v137
    %v315 = vunpack.c.l.b16 %v138
    %v316 = vunpack.c.h.b16 %v138
    %v317 = vunpack.c.l.b16 %v139
    %v318 = vunpack.c.h.b16 %v139
    %v319 = vunpack.c.l.b16 %v140
    %v320 = vunpack.c.h.b16 %v140
    %v321 = vunpack.c.l.b16 %v141
    %v322 = vunpack.c.h.b16 %v141
    %v323 = vunpack.c.l.b16 %v142
    %v324 = vunpack.c.h.b16 %v142
    %v325 = vunpack.c.l.b16 %v143
    %v326 = vunpack.c.h.b16 %v143
    %v327 = vunpack.c.l.b16 %v144
    %v328 = vunpack.c.h.b16 %v144
    %v329 = vunpack.c.l.b16 %v145
    %v330 = vunpack.c.h.b16 %v145
    %v331 = vunpack.c.l.b16 %v146
    %v332 = vunpack.c.h.b16 %v146
    %v333 = vunpack.c.l.b16 %v147
    %v334 = vunpack.c.h.b16 %v147
    %v335 = vunpack.c.l.b16 %v148
    %v336 = vunpack.c.h.b16 %v148
    %v337 = vunpack.c.l.b16 %v149
    %v338 = vunpack.c.h.b16 %v149
    %v339 = vunpack.c.l.b16 %v150
    %v340 = vunpack.c.h.b16 %v150
    %v341 = vunpack.c.l.b16 %v151
    %v342 = vunpack.c.h.b16 %v151
    %v343 = vunpack.c.l.b16 %v152
    %v344 = vunpack.c.h.b16 %v152
    %v345 = vunpack.c.l.b16 %v153
    %v346 = vunpack.c.h.b16 %v153
    %v347 = vunpack.c.l.b16 %v154
    %v348 = vunpack.c.h.b16 %v154
    %v349 = vunpack.c.l.b16 %v155
    %v350 = vunpack.c.h.b16 %v155
    %v351 = vunpack.c.l.b16 %v156
    %v352 = vunpack.c.h.b16 %v156
    %v353 = vunpack.c.l.b16 %v157
    %v354 = vunpack.c.h.b16 %v157
    %v355 = vunpack.c.l.b16 %v158
    %v356 = vunpack.c.h.b16 %v158
    %v357 = vunpack.c.l.b16 %v159
    %v358 = vunpack.c.h.b16 %v159
    %v359 = vunpack.c.l.b16 %v160
    %v360 = vunpack.c.h.b16 %v160
    %v361 = vunpack.c.l.b16 %v161
    %v362 = vunpack.c.h.b16 %v161
    %v363 = vunpack.c.l.b16 %v162
    %v364 = vunpack.c.h.b16 %v162
    %v365 = vpack.c.b16 %v241, %v237
    %v366 = vpack.c.b16 %v242, %v238
    %v367 = vpack.c.b16 %v243, %v239
    %v368 = vpack.c.b16 %v244, %v240
    %v369 = vpack.c.b16 %v249, %v245
    %v370 = vpack.c.b16 %v250, %v246
    %v371 = vpack.c.b16 %v251, %v247
    %v372 = vpack.c.b16 %v252, %v248
    %v373 = vpack.c.b16 %v257, %v253
    %v374 = vpack.c.b16 %v258, %v254
    %v375 = vpack.c.b16 %v259, %v255
    %v376 = vpack.c.b16 %v260, %v256
    %v377 = vpack.c.b16 %v265, %v261
    %v378 = vpack.c.b16 %v266, %v262
    %v379 = vpack.c.b16 %v267, %v263
    %v380 = vpack.c.b16 %v268, %v264
    %v381 = vpack.c.b16 %v273, %v269
    %v382 = vpack.c.b16 %v274, %v270
    %v383 = vpack.c.b16 %v275, %v271
    %v384 = vpack.c.b16 %v276, %v272
    %v385 = vpack.c.b16 %v281, %v277
    %v386 = vpack.c.b16 %v282, %v278
    %v387 = vpack.c.b16 %v283, %v279
    %v388 = vpack.c.b16 %v284, %v280
    %v389 = vpack.c.b16 %v289, %v285
    %v390 = vpack.c.b16 %v290, %v286
    %v391 = vpack.c.b16 %v291, %v287
    %v392 = vpack.c.b16 %v292, %v288
    %v393 = vpack.c.b16 %v297, %v293
    %v394 = vpack.c.b16 %v298, %v294
    %v395 = vpack.c.b16 %v299, %v295
    %v396 = vpack.c.b16 %v300, %v296
    %v397 = vpack.c.b16 %v305, %v301
    %v398 = vpack.c.b16 %v306, %v302
    %v399 = vpack.c.b16 %v307, %v303
    %v400 = vpack.c.b16 %v308, %v304
    %v401 = vpack.c.b16 %v313, %v309
    %v402 = vpack.c.b16 %v314, %v310
    %v403 = vpack.c.b16 %v315, %v311
    %v404 = vpack.c.b16 %v316, %v312
    %v405 = vpack.c.b16 %v321, %v317
    %v406 = vpack.c.b16 %v322, %v318
    %v407 = vpack.c.b16 %v323, %v319
    %v408 = vpack.c.b16 %v324, %v320
    %v409 = vpack.c.b16 %v329, %v325
    %v410 = vpack.c.b16 %v330, %v326
    %v411 = vpack.c.b16 %v331, %v327
    %v412 = vpack.c.b16 %v332, %v328
    %v413 = vpack.c.b16 %v337, %v333
    %v414 = vpack.c.b16 %v338, %v334
    %v415 = vpack.c.b16 %v339, %v335
    %v416 = vpack.c.b16 %v340, %v336
    %v417 = vpack.c.b16 %v345, %v341
    %v418 = vpack.c.b16 %v346, %v342
    %v419 = vpack.c.b16 %v347, %v343
    %v420 = vpack.c.b16 %v348, %v344
    %v421 = vpack.c.b16 %v353, %v349
    %v422 = vpack.c.b16 %v354, %v350
    %v423 = vpack.c.b16 %v355, %v351
    %v424 = vpack.c.b16 %v356, %v352
    %v425 = vpack.c.b16 %v361, %v357
    %v426 = vpack.c.b16 %v362, %v358
    %v427 = vpack.c.b16 %v363, %v359
    %v428 = vpack.c.b16 %v364, %v360
    %493 = vmatprep.subr.bf16.mxu0 %v366
    %494 = vmatpush1.bf16.msra.mxu0 %v365
    %495 = vmatprep.subr.bf16.mxu0 %v370
    %496 = vmatpush1.bf16.msra.mxu0 %v369
    %497 = vmatprep.subr.bf16.mxu0 %v374
    %498 = vmatpush1.bf16.msra.mxu0 %v373
    %499 = vmatprep.subr.bf16.mxu0 %v378
    %500 = vmatpush1.bf16.msra.mxu0 %v377
    %501 = vmatprep.subr.bf16.mxu0 %v382
    %502 = vmatpush1.bf16.msra.mxu0 %v381
    %503 = vmatprep.subr.bf16.mxu0 %v386
    %504 = vmatpush1.bf16.msra.mxu0 %v385
    %505 = vmatprep.subr.bf16.mxu0 %v390
    %506 = vmatpush1.bf16.msra.mxu0 %v389
    %507 = vmatprep.subr.bf16.mxu0 %v394
    %508 = vmatpush1.bf16.msra.mxu0 %v393
    %509 = vmatprep.subr.bf16.mxu0 %v398
    %510 = vmatpush1.bf16.msra.mxu0 %v397
    %511 = vmatprep.subr.bf16.mxu0 %v402
    %512 = vmatpush1.bf16.msra.mxu0 %v401
    %513 = vmatprep.subr.bf16.mxu0 %v406
    %514 = vmatpush1.bf16.msra.mxu0 %v405
    %515 = vmatprep.subr.bf16.mxu0 %v410
    %516 = vmatpush1.bf16.msra.mxu0 %v409
    %517 = vmatprep.subr.bf16.mxu0 %v414
    %518 = vmatpush1.bf16.msra.mxu0 %v413
    %519 = vmatprep.subr.bf16.mxu0 %v418
    %520 = vmatpush1.bf16.msra.mxu0 %v417
    %521 = vmatprep.subr.bf16.mxu0 %v422
    %522 = vmatpush1.bf16.msra.mxu0 %v421
    %523 = vmatprep.subr.bf16.mxu0 %v426
    %524 = vmatpush1.bf16.msra.mxu0 %v425
    %525 = vmatprep.mubr.bf16.mxu0 %v170
    %526 = vmatmul.mubr.bf16.gmra.mrb[0].mxu0 %v169
    %v527 = vpop.f32.mrb[0].mxu0
    %v528 = vadd.f32 0.0, %v527
    %v529 = vpop.f32.mrb[0].mxu0
    %v530 = vadd.f32 0.0, %v529
    %v531 = vpop.f32.mrb[0].mxu0
    %v532 = vadd.f32 0.0, %v531
    %v533 = vpop.f32.mrb[0].mxu0
    %v534 = vadd.f32 0.0, %v533
    %535 = vdwg.mxu0
    %536 = vmatprep.subr.bf16.mxu0 %v368
    %537 = vmatpush1.bf16.msra.mxu0 %v367
    %538 = vmatprep.subr.bf16.mxu0 %v372
    %539 = vmatpush1.bf16.msra.mxu0 %v371
    %540 = vmatprep.subr.bf16.mxu0 %v376
    %541 = vmatpush1.bf16.msra.mxu0 %v375
    %542 = vmatprep.subr.bf16.mxu0 %v380
    %543 = vmatpush1.bf16.msra.mxu0 %v379
    %544 = vmatprep.subr.bf16.mxu0 %v384
    %545 = vmatpush1.bf16.msra.mxu0 %v383
    %546 = vmatprep.subr.bf16.mxu0 %v388
    %547 = vmatpush1.bf16.msra.mxu0 %v387
    %548 = vmatprep.subr.bf16.mxu0 %v392
    %549 = vmatpush1.bf16.msra.mxu0 %v391
    %550 = vmatprep.subr.bf16.mxu0 %v396
    %551 = vmatpush1.bf16.msra.mxu0 %v395
    %552 = vmatprep.subr.bf16.mxu0 %v400
    %553 = vmatpush1.bf16.msra.mxu0 %v399
    %554 = vmatprep.subr.bf16.mxu0 %v404
    %555 = vmatpush1.bf16.msra.mxu0 %v403
    %556 = vmatprep.subr.bf16.mxu0 %v408
    %557 = vmatpush1.bf16.msra.mxu0 %v407
    %558 = vmatprep.subr.bf16.mxu0 %v412
    %559 = vmatpush1.bf16.msra.mxu0 %v411
    %560 = vmatprep.subr.bf16.mxu0 %v416
    %561 = vmatpush1.bf16.msra.mxu0 %v415
    %562 = vmatprep.subr.bf16.mxu0 %v420
    %563 = vmatpush1.bf16.msra.mxu0 %v419
    %564 = vmatprep.subr.bf16.mxu0 %v424
    %565 = vmatpush1.bf16.msra.mxu0 %v423
    %566 = vmatprep.subr.bf16.mxu0 %v428
    %567 = vmatpush1.bf16.msra.mxu0 %v427
    %568 = vmatprep.mubr.bf16.mxu0 %v170
    %569 = vmatmul.mubr.bf16.gmra.mrb[0].mxu0 %v169
    %v570 = vpop.f32.mrb[0].mxu0
    %v571 = vadd.f32 0.0, %v570
    %v572 = vpop.f32.mrb[0].mxu0
    %v573 = vadd.f32 0.0, %v572
    %v574 = vpop.f32.mrb[0].mxu0
    %v575 = vadd.f32 0.0, %v574
    %v576 = vpop.f32.mrb[0].mxu0
    %v577 = vadd.f32 0.0, %v576
    %578 = vdwg.mxu0
    %v579 = vpack.c.bf16 %v532, %v528
    %v580 = vpack.c.bf16 %v534, %v530
    %v581 = vpack.c.bf16 %v575, %v571
    %v582 = vpack.c.bf16 %v577, %v573
    %v583 = vld [vmem:[%s3] sm:$0xf]
    %v586 = vunpack.c.l.s4 1966171168
    %v587 = vunpack.c.0.s8 %v586
    %v588 = vlaneseq
    %v589 = vshrl.u32 %v588, 7
    %v590 = vsub.s32 %v587, %v589
    %v591 = vrot.slane %v583, %v590
    %v592 = vcombine.high %v591, %v591
    %v594 = vunpack.c.l.s4 1966171168
    %v595 = vunpack.c.0.s8 %v594
    %v596 = vlaneseq
    %v597 = vshrl.u32 %v596, 7
    %v598 = vsub.s32 %v595, %v597
    %v599 = vrot.slane %v591, %v598
    %v601 = vunpack.c.l.s4 1966171168
    %v602 = vunpack.c.0.s8 %v601
    %v603 = vlaneseq
    %v604 = vshrl.u32 %v603, 7
    %v605 = vsub.s32 %v602, %v604
    %v606 = vrot.slane %v592, %v605
    %v607 = vcombine.high %v599, %v599
    %v608 = vcombine.high %v606, %v606
    %v610 = vpack.i.b16 %v599, %v599
    %v612 = vlaneseq
    %v613 = vshrl.u32 %v612, 7
    %v614 = vsub.s32 0, %v613
    %v615 = vrot.slane %v610, %v614
    %v617 = vpack.i.b16 %v606, %v606
    %v619 = vlaneseq
    %v620 = vshrl.u32 %v619, 7
    %v621 = vsub.s32 0, %v620
    %v622 = vrot.slane %v617, %v621
    %v624 = vpack.i.b16 %v607, %v607
    %v626 = vlaneseq
    %v627 = vshrl.u32 %v626, 7
    %v628 = vsub.s32 0, %v627
    %v629 = vrot.slane %v624, %v628
    %v631 = vpack.i.b16 %v608, %v608
    %v633 = vlaneseq
    %v634 = vshrl.u32 %v633, 7
    %v635 = vsub.s32 0, %v634
    %v636 = vrot.slane %v631, %v635
    %v637 = vadd.bf16 %v579, %v615
    %v638 = vadd.bf16 %v580, %v622
    %v639 = vadd.bf16 %v581, %v629
    %v640 = vadd.bf16 %v582, %v636
    %v641 = vmax.bf16 %v637, 0
    %v642 = vmax.bf16 %v638, 0
    %v643 = vmax.bf16 %v639, 0
    %v644 = vmax.bf16 %v640, 0
    %v645 = vld [vmem:[#allocation9] sm:$0xf]
    %v646 = vld [vmem:[#allocation9 + $0x4] sm:$0xf]
    %v647 = vld [vmem:[#allocation9 + $0x8] sm:$0xf]
    %v648 = vld [vmem:[#allocation9 + $0xc] sm:$0xf]
    %v649 = vld [vmem:[#allocation9 + $0x10] sm:$0xf]
    %v650 = vld [vmem:[#allocation9 + $0x14] sm:$0xf]
    %v651 = vld [vmem:[#allocation9 + $0x18] sm:$0xf]
    %v652 = vld [vmem:[#allocation9 + $0x1c] sm:$0xf]
    %v653 = vld [vmem:[#allocation9 + $0x20] sm:$0xf]
    %v654 = vld [vmem:[#allocation9 + $0x24] sm:$0xf]
    %v655 = vld [vmem:[#allocation9 + $0x28] sm:$0xf]
    %v656 = vld [vmem:[#allocation9 + $0x2c] sm:$0xf]
    %v657 = vld [vmem:[#allocation9 + $0x30] sm:$0xf]
    %v658 = vld [vmem:[#allocation9 + $0x34] sm:$0xf]
    %v659 = vld [vmem:[#allocation9 + $0x38] sm:$0xf]
    %v660 = vld [vmem:[#allocation9 + $0x3c] sm:$0xf]
    %v661 = vld [vmem:[#allocation9 + $0x40] sm:$0xf]
    %v662 = vld [vmem:[#allocation9 + $0x44] sm:$0xf]
    %v663 = vld [vmem:[#allocation9 + $0x48] sm:$0xf]
    %v664 = vld [vmem:[#allocation9 + $0x4c] sm:$0xf]
    %v665 = vld [vmem:[#allocation9 + $0x50] sm:$0xf]
    %v666 = vld [vmem:[#allocation9 + $0x54] sm:$0xf]
    %v667 = vld [vmem:[#allocation9 + $0x58] sm:$0xf]
    %v668 = vld [vmem:[#allocation9 + $0x5c] sm:$0xf]
    %v669 = vld [vmem:[#allocation9 + $0x60] sm:$0xf]
    %v670 = vld [vmem:[#allocation9 + $0x64] sm:$0xf]
    %v671 = vld [vmem:[#allocation9 + $0x68] sm:$0xf]
    %v672 = vld [vmem:[#allocation9 + $0x6c] sm:$0xf]
    %v673 = vld [vmem:[#allocation9 + $0x70] sm:$0xf]
    %v674 = vld [vmem:[#allocation9 + $0x74] sm:$0xf]
    %v675 = vld [vmem:[#allocation9 + $0x78] sm:$0xf]
    %v676 = vld [vmem:[#allocation9 + $0x7c] sm:$0xf]
    %v677 = vld [vmem:[#allocation9 + $0x80] sm:$0xf]
    %v678 = vld [vmem:[#allocation9 + $0x84] sm:$0xf]
    %v679 = vld [vmem:[#allocation9 + $0x88] sm:$0xf]
    %v680 = vld [vmem:[#allocation9 + $0x8c] sm:$0xf]
    %v681 = vld [vmem:[#allocation9 + $0x90] sm:$0xf]
    %v682 = vld [vmem:[#allocation9 + $0x94] sm:$0xf]
    %v683 = vld [vmem:[#allocation9 + $0x98] sm:$0xf]
    %v684 = vld [vmem:[#allocation9 + $0x9c] sm:$0xf]
    %v685 = vld [vmem:[#allocation9 + $0xa0] sm:$0xf]
    %v686 = vld [vmem:[#allocation9 + $0xa4] sm:$0xf]
    %v687 = vld [vmem:[#allocation9 + $0xa8] sm:$0xf]
    %v688 = vld [vmem:[#allocation9 + $0xac] sm:$0xf]
    %v689 = vld [vmem:[#allocation9 + $0xb0] sm:$0xf]
    %v690 = vld [vmem:[#allocation9 + $0xb4] sm:$0xf]
    %v691 = vld [vmem:[#allocation9 + $0xb8] sm:$0xf]
    %v692 = vld [vmem:[#allocation9 + $0xbc] sm:$0xf]
    %v693 = vld [vmem:[#allocation9 + $0xc0] sm:$0xf]
    %v694 = vld [vmem:[#allocation9 + $0xc4] sm:$0xf]
    %v695 = vld [vmem:[#allocation9 + $0xc8] sm:$0xf]
    %v696 = vld [vmem:[#allocation9 + $0xcc] sm:$0xf]
    %v697 = vld [vmem:[#allocation9 + $0xd0] sm:$0xf]
    %v698 = vld [vmem:[#allocation9 + $0xd4] sm:$0xf]
    %v699 = vld [vmem:[#allocation9 + $0xd8] sm:$0xf]
    %v700 = vld [vmem:[#allocation9 + $0xdc] sm:$0xf]
    %v701 = vld [vmem:[#allocation9 + $0xe0] sm:$0xf]
    %v702 = vld [vmem:[#allocation9 + $0xe4] sm:$0xf]
    %v703 = vld [vmem:[#allocation9 + $0xe8] sm:$0xf]
    %v704 = vld [vmem:[#allocation9 + $0xec] sm:$0xf]
    %v705 = vld [vmem:[#allocation9 + $0xf0] sm:$0xf]
    %v706 = vld [vmem:[#allocation9 + $0xf4] sm:$0xf]
    %v707 = vld [vmem:[#allocation9 + $0xf8] sm:$0xf]
    %v708 = vld [vmem:[#allocation9 + $0xfc] sm:$0xf]
    %v709 = vld [vmem:[%s5] sm:$0x1]
    %v711 = vlaneseq
    %v712 = vshrl.u32 %v711, 7
    %v713 = vsub.s32 0, %v712
    %v714 = vrot.slane %v709, %v713
    %v780 = vunpack.c.l.b16 %v645
    %v781 = vunpack.c.l.b16 %v646
    %v782 = vunpack.c.l.b16 %v647
    %v783 = vunpack.c.l.b16 %v648
    %v784 = vunpack.c.l.b16 %v649
    %v785 = vunpack.c.l.b16 %v650
    %v786 = vunpack.c.l.b16 %v651
    %v787 = vunpack.c.l.b16 %v652
    %v788 = vunpack.c.l.b16 %v653
    %v789 = vunpack.c.l.b16 %v654
    %v790 = vunpack.c.l.b16 %v655
    %v791 = vunpack.c.l.b16 %v656
    %v792 = vunpack.c.l.b16 %v657
    %v793 = vunpack.c.l.b16 %v658
    %v794 = vunpack.c.l.b16 %v659
    %v795 = vunpack.c.l.b16 %v660
    %v796 = vunpack.c.l.b16 %v661
    %v797 = vunpack.c.l.b16 %v662
    %v798 = vunpack.c.l.b16 %v663
    %v799 = vunpack.c.l.b16 %v664
    %v800 = vunpack.c.l.b16 %v665
    %v801 = vunpack.c.l.b16 %v666
    %v802 = vunpack.c.l.b16 %v667
    %v803 = vunpack.c.l.b16 %v668
    %v804 = vunpack.c.l.b16 %v669
    %v805 = vunpack.c.l.b16 %v670
    %v806 = vunpack.c.l.b16 %v671
    %v807 = vunpack.c.l.b16 %v672
    %v808 = vunpack.c.l.b16 %v673
    %v809 = vunpack.c.l.b16 %v674
    %v810 = vunpack.c.l.b16 %v675
    %v811 = vunpack.c.l.b16 %v676
    %v812 = vunpack.c.l.b16 %v677
    %v813 = vunpack.c.l.b16 %v678
    %v814 = vunpack.c.l.b16 %v679
    %v815 = vunpack.c.l.b16 %v680
    %v816 = vunpack.c.l.b16 %v681
    %v817 = vunpack.c.l.b16 %v682
    %v818 = vunpack.c.l.b16 %v683
    %v819 = vunpack.c.l.b16 %v684
    %v820 = vunpack.c.l.b16 %v685
    %v821 = vunpack.c.l.b16 %v686
    %v822 = vunpack.c.l.b16 %v687
    %v823 = vunpack.c.l.b16 %v688
    %v824 = vunpack.c.l.b16 %v689
    %v825 = vunpack.c.l.b16 %v690
    %v826 = vunpack.c.l.b16 %v691
    %v827 = vunpack.c.l.b16 %v692
    %v828 = vunpack.c.l.b16 %v693
    %v829 = vunpack.c.l.b16 %v694
    %v830 = vunpack.c.l.b16 %v695
    %v831 = vunpack.c.l.b16 %v696
    %v832 = vunpack.c.l.b16 %v697
    %v833 = vunpack.c.l.b16 %v698
    %v834 = vunpack.c.l.b16 %v699
    %v835 = vunpack.c.l.b16 %v700
    %v836 = vunpack.c.l.b16 %v701
    %v837 = vunpack.c.l.b16 %v702
    %v838 = vunpack.c.l.b16 %v703
    %v839 = vunpack.c.l.b16 %v704
    %v840 = vunpack.c.l.b16 %v705
    %v841 = vunpack.c.l.b16 %v706
    %v842 = vunpack.c.l.b16 %v707
    %v843 = vunpack.c.l.b16 %v708
    %v844 = vpack.c.b16 %v781, %v780
    %v845 = vpack.c.b16 %v783, %v782
    %v846 = vpack.c.b16 %v785, %v784
    %v847 = vpack.c.b16 %v787, %v786
    %v848 = vpack.c.b16 %v789, %v788
    %v849 = vpack.c.b16 %v791, %v790
    %v850 = vpack.c.b16 %v793, %v792
    %v851 = vpack.c.b16 %v795, %v794
    %v852 = vpack.c.b16 %v797, %v796
    %v853 = vpack.c.b16 %v799, %v798
    %v854 = vpack.c.b16 %v801, %v800
    %v855 = vpack.c.b16 %v803, %v802
    %v856 = vpack.c.b16 %v805, %v804
    %v857 = vpack.c.b16 %v807, %v806
    %v858 = vpack.c.b16 %v809, %v808
    %v859 = vpack.c.b16 %v811, %v810
    %v860 = vpack.c.b16 %v813, %v812
    %v861 = vpack.c.b16 %v815, %v814
    %v862 = vpack.c.b16 %v817, %v816
    %v863 = vpack.c.b16 %v819, %v818
    %v864 = vpack.c.b16 %v821, %v820
    %v865 = vpack.c.b16 %v823, %v822
    %v866 = vpack.c.b16 %v825, %v824
    %v867 = vpack.c.b16 %v827, %v826
    %v868 = vpack.c.b16 %v829, %v828
    %v869 = vpack.c.b16 %v831, %v830
    %v870 = vpack.c.b16 %v833, %v832
    %v871 = vpack.c.b16 %v835, %v834
    %v872 = vpack.c.b16 %v837, %v836
    %v873 = vpack.c.b16 %v839, %v838
    %v874 = vpack.c.b16 %v841, %v840
    %v875 = vpack.c.b16 %v843, %v842
    %908 = vmatprep.subr.bf16.mxu0 0
    %909 = vmatpush1.bf16.msra.mxu0 %v844
    %910 = vmatprep.subr.bf16.mxu0 0
    %911 = vmatpush1.bf16.msra.mxu0 %v845
    %912 = vmatprep.subr.bf16.mxu0 0
    %913 = vmatpush1.bf16.msra.mxu0 %v846
    %914 = vmatprep.subr.bf16.mxu0 0
    %915 = vmatpush1.bf16.msra.mxu0 %v847
    %916 = vmatprep.subr.bf16.mxu0 0
    %917 = vmatpush1.bf16.msra.mxu0 %v848
    %918 = vmatprep.subr.bf16.mxu0 0
    %919 = vmatpush1.bf16.msra.mxu0 %v849
    %920 = vmatprep.subr.bf16.mxu0 0
    %921 = vmatpush1.bf16.msra.mxu0 %v850
    %922 = vmatprep.subr.bf16.mxu0 0
    %923 = vmatpush1.bf16.msra.mxu0 %v851
    %924 = vmatprep.subr.bf16.mxu0 0
    %925 = vmatpush1.bf16.msra.mxu0 %v852
    %926 = vmatprep.subr.bf16.mxu0 0
    %927 = vmatpush1.bf16.msra.mxu0 %v853
    %928 = vmatprep.subr.bf16.mxu0 0
    %929 = vmatpush1.bf16.msra.mxu0 %v854
    %930 = vmatprep.subr.bf16.mxu0 0
    %931 = vmatpush1.bf16.msra.mxu0 %v855
    %932 = vmatprep.subr.bf16.mxu0 0
    %933 = vmatpush1.bf16.msra.mxu0 %v856
    %934 = vmatprep.subr.bf16.mxu0 0
    %935 = vmatpush1.bf16.msra.mxu0 %v857
    %936 = vmatprep.subr.bf16.mxu0 0
    %937 = vmatpush1.bf16.msra.mxu0 %v858
    %938 = vmatprep.subr.bf16.mxu0 0
    %939 = vmatpush1.bf16.msra.mxu0 %v859
    %940 = vmatprep.mubr.bf16.mxu0 %v642
    %941 = vmatmul.mubr.bf16.gmra.mrb[0].mxu0 %v641
    %v942 = vpop.f32.mrb[0].mxu0
    %v943 = vadd.f32 %v714, %v942
    %v944 = vpop.f32.mrb[0].mxu0
    %v945 = vpop.f32.mrb[0].mxu0
    %v946 = vadd.f32 %v714, %v945
    %v947 = vpop.f32.mrb[0].mxu0
    %948 = vdwg.mxu0
    %949 = vmatprep.subr.bf16.mxu0 0
    %950 = vmatpush1.bf16.msra.mxu0 %v860
    %951 = vmatprep.subr.bf16.mxu0 0
    %952 = vmatpush1.bf16.msra.mxu0 %v861
    %953 = vmatprep.subr.bf16.mxu0 0
    %954 = vmatpush1.bf16.msra.mxu0 %v862
    %955 = vmatprep.subr.bf16.mxu0 0
    %956 = vmatpush1.bf16.msra.mxu0 %v863
    %957 = vmatprep.subr.bf16.mxu0 0
    %958 = vmatpush1.bf16.msra.mxu0 %v864
    %959 = vmatprep.subr.bf16.mxu0 0
    %960 = vmatpush1.bf16.msra.mxu0 %v865
    %961 = vmatprep.subr.bf16.mxu0 0
    %962 = vmatpush1.bf16.msra.mxu0 %v866
    %963 = vmatprep.subr.bf16.mxu0 0
    %964 = vmatpush1.bf16.msra.mxu0 %v867
    %965 = vmatprep.subr.bf16.mxu0 0
    %966 = vmatpush1.bf16.msra.mxu0 %v868
    %967 = vmatprep.subr.bf16.mxu0 0
    %968 = vmatpush1.bf16.msra.mxu0 %v869
    %969 = vmatprep.subr.bf16.mxu0 0
    %970 = vmatpush1.bf16.msra.mxu0 %v870
    %971 = vmatprep.subr.bf16.mxu0 0
    %972 = vmatpush1.bf16.msra.mxu0 %v871
    %973 = vmatprep.subr.bf16.mxu0 0
    %974 = vmatpush1.bf16.msra.mxu0 %v872
    %975 = vmatprep.subr.bf16.mxu0 0
    %976 = vmatpush1.bf16.msra.mxu0 %v873
    %977 = vmatprep.subr.bf16.mxu0 0
    %978 = vmatpush1.bf16.msra.mxu0 %v874
    %979 = vmatprep.subr.bf16.mxu0 0
    %980 = vmatpush1.bf16.msra.mxu0 %v875
    %981 = vmatprep.mubr.bf16.mxu0 %v644
    %982 = vmatmul.mubr.bf16.gmra.mrb[0].mxu0 %v643
    %v983 = vpop.f32.mrb[0].mxu0
    %v984 = vadd.f32 %v943, %v983
    %v985 = vpop.f32.mrb[0].mxu0
    %v986 = vpop.f32.mrb[0].mxu0
    %v987 = vadd.f32 %v946, %v986
    %v988 = vpop.f32.mrb[0].mxu0
    %989 = vdwg.mxu0
    %v990 = vtanh.pop %v984
    %v991 = vtanh.pop %v987
    %v992 = vld [vmem:[%s6] sm:$0x1]
    %s993 = sld [smem:[#allocation3]]
    %v994 = vstv %s993
    %995 = vmatprep.subr.mxu0 0.0
    %996 = vmatpush1.xpose.msra.mxu0 %v990
    %997 = vmatprep.subr.mxu0 0.0
    %998 = vmatpush1.xpose.msra.mxu0 %v991
    %999 = vmatprep.subr.mxu0 0.0
    %1000 = vmatpush1.xpose.msra.mxu0 0.0
    %1001 = vmatprep.subr.mxu0 0.0
    %1002 = vmatpush1.xpose.msra.mxu0 0.0
    %1003 = vmatprep.subr.mxu0 0.0
    %1004 = vmatpush1.xpose.msra.mxu0 0.0
    %1005 = vmatprep.subr.mxu0 0.0
    %1006 = vmatpush1.xpose.msra.mxu0 0.0
    %1007 = vmatprep.subr.mxu0 0.0
    %1008 = vmatpush1.xpose.msra.mxu0 0.0
    %1009 = vmatprep.subr.mxu0 0.0
    %1010 = vmatpush1.xpose.msra.mxu0 0.0
    %1011 = vmatprep.subr.mxu0 0.0
    %1012 = vmatpush1.xpose.msra.mxu0 0.0
    %1013 = vmatprep.subr.mxu0 0.0
    %1014 = vmatpush1.xpose.msra.mxu0 0.0
    %1015 = vmatprep.subr.mxu0 0.0
    %1016 = vmatpush1.xpose.msra.mxu0 0.0
    %1017 = vmatprep.subr.mxu0 0.0
    %1018 = vmatpush1.xpose.msra.mxu0 0.0
    %1019 = vmatprep.subr.mxu0 0.0
    %1020 = vmatpush1.xpose.msra.mxu0 0.0
    %1021 = vmatprep.subr.mxu0 0.0
    %1022 = vmatpush1.xpose.msra.mxu0 0.0
    %1023 = vmatprep.subr.mxu0 0.0
    %1024 = vmatpush1.xpose.msra.mxu0 0.0
    %1025 = vmatprep.subr.mxu0 0.0
    %1026 = vmatpush1.xpose.msra.mxu0 0.0
    %1027 = vmatprep.subr.mxu0 0.0
    %1028 = vmatpush1.xpose.msra.mxu0 0.0
    %1029 = vmatprep.subr.mxu0 0.0
    %1030 = vmatpush1.xpose.msra.mxu0 0.0
    %1031 = vmatprep.subr.mxu0 0.0
    %1032 = vmatpush1.xpose.msra.mxu0 0.0
    %1033 = vmatprep.subr.mxu0 0.0
    %1034 = vmatpush1.xpose.msra.mxu0 0.0
    %1035 = vmatprep.subr.mxu0 0.0
    %1036 = vmatpush1.xpose.msra.mxu0 0.0
    %1037 = vmatprep.subr.mxu0 0.0
    %1038 = vmatpush1.xpose.msra.mxu0 0.0
    %1039 = vmatprep.subr.mxu0 0.0
    %1040 = vmatpush1.xpose.msra.mxu0 0.0
    %1041 = vmatprep.subr.mxu0 0.0
    %1042 = vmatpush1.xpose.msra.mxu0 0.0
    %1043 = vmatprep.subr.mxu0 0.0
    %1044 = vmatpush1.xpose.msra.mxu0 0.0
    %1045 = vmatprep.subr.mxu0 0.0
    %1046 = vmatpush1.xpose.msra.mxu0 0.0
    %1047 = vmatprep.subr.mxu0 0.0
    %1048 = vmatpush1.xpose.msra.mxu0 0.0
    %1049 = vmatprep.subr.mxu0 0.0
    %1050 = vmatpush1.xpose.msra.mxu0 0.0
    %1051 = vmatprep.subr.mxu0 0.0
    %1052 = vmatpush1.xpose.msra.mxu0 0.0
    %1053 = vmatprep.subr.mxu0 0.0
    %1054 = vmatpush1.xpose.msra.mxu0 0.0
    %1055 = vmatprep.subr.mxu0 0.0
    %1056 = vmatpush1.xpose.msra.mxu0 0.0
    %1057 = vmatprep.subr.mxu0 0.0
    %1058 = vmatpush1.xpose.msra.mxu0 0.0
    %1059 = vmatprep.mubr.f32.mxu0 0.0
    %1060 = vmatmul.mubr.f32.gmra.mrb[0].mxu0 %v992
    %v1061 = vpop.f32.mrb[0].mxu0
    %v1062 = vadd.f32 %v994, %v1061
    %v1063 = vpop.f32.mrb[0].mxu0
    %1064 = vdwg.mxu0
    %s1065 = sadd.s32 0, 0
    %s1066 = smul.u32 %s1065, 16
    %v1067 = vlaneseq
    %v1068 = vand.u32 %v1067, 127
    %v1069 = vstv %s1066
    %v1070 = vadd.s32 %v1069, %v1068
    %s1071 = sld [smem:[#allocation2]]
    %v1072 = vstv %s1071
    %vm1073 = vcmp.lt.s32.totalorder %v1070, %v1072
    %v1074 = vsel %vm1073, %v1062, -1e+30
    %v1075 = vld [vmem:[#allocation10] sm:$0x1]
    %vm1076 = vcmask 122880
    %v1077 = vsel %vm1076, %v1074, -inf
    %1078 = vmax.xlane.f32.xlu0 %v1077
    %v1079 = vpop.xlane.xlu0 %1078
    %v1080 = vmax.f32 %v1075, %v1079
    %v1081 = vsub.f32 %v1075, %v1080
    %v1082 = vmul.f32 %v1081, 1.442695
    %v1083 = vpow.pop %v1082
    %1085 = vset.pattern.permute.xlu0 0
    %1086 = vperm.xlu0 %1085, %v1080
    %v1087 = vpop.permute.xlu0 %1086
    %v1089 = vlaneseq
    %v1090 = vshrl.u32 %v1089, 7
    %v1091 = vsub.s32 0, %v1090
    %v1092 = vrot.slane %v1087, %v1091
    %v1093 = vsub.f32 %v1074, %v1092
    %v1094 = vmul.f32 %v1093, 1.442695
    %v1095 = vpow.pop %v1094
    %v1096 = vsel %vm1073, %v1095, 0.0
    %v1097 = vld [vmem:[#allocation11] sm:$0x1]
    %v1098 = vmul.f32 %v1083, %v1097
    %v1099 = vsel %vm1076, %v1096, 0.0
    %1100 = vadd.xlane.f32.xlu0 %v1099
    %v1101 = vpop.xlane.xlu0 %1100
    %v1102 = vadd.f32 %v1098, %v1101
    %vm1103 = vcmask 0
    %1104 = vst.msk [vmem:[#allocation11] sm:$0x1] %vm1103, %v1102
    %v1105 = vld [vmem:[#allocation13] sm:$0xf]
    %1107 = vset.pattern.permute.xlu0 0
    %1108 = vperm.xlu0 %1107, %v1083
    %v1109 = vpop.permute.xlu0 %1108
    %v1111 = vlaneseq
    %v1112 = vshrl.u32 %v1111, 7
    %v1113 = vsub.s32 0, %v1112
    %v1114 = vrot.slane %v1109, %v1113
    %v1115 = vmul.f32 %v1114, %v1105
    %v1116 = vpack.c.bf16 %v1096, %v1096
    %vm1117 = vcmask 130048
    %v1119 = vsel %vm1117, %v1116, 0
    %1121 = vmatprep.subr.bf16.mxu0 %v642
    %1122 = vmatpush1.bf16.msra.mxu0 %v641
    %1123 = vmatprep.subr.bf16.mxu0 0
    %1124 = vmatpush1.bf16.msra.mxu0 0
    %1125 = vmatprep.subr.bf16.mxu0 0
    %1126 = vmatpush1.bf16.msra.mxu0 0
    %1127 = vmatprep.subr.bf16.mxu0 0
    %1128 = vmatpush1.bf16.msra.mxu0 0
    %1129 = vmatprep.subr.bf16.mxu0 0
    %1130 = vmatpush1.bf16.msra.mxu0 0
    %1131 = vmatprep.subr.bf16.mxu0 0
    %1132 = vmatpush1.bf16.msra.mxu0 0
    %1133 = vmatprep.subr.bf16.mxu0 0
    %1134 = vmatpush1.bf16.msra.mxu0 0
    %1135 = vmatprep.subr.bf16.mxu0 0
    %1136 = vmatpush1.bf16.msra.mxu0 0
    %1137 = vmatprep.subr.bf16.mxu0 0
    %1138 = vmatpush1.bf16.msra.mxu0 0
    %1139 = vmatprep.subr.bf16.mxu0 0
    %1140 = vmatpush1.bf16.msra.mxu0 0
    %1141 = vmatprep.subr.bf16.mxu0 0
    %1142 = vmatpush1.bf16.msra.mxu0 0
    %1143 = vmatprep.subr.bf16.mxu0 0
    %1144 = vmatpush1.bf16.msra.mxu0 0
    %1145 = vmatprep.subr.bf16.mxu0 0
    %1146 = vmatpush1.bf16.msra.mxu0 0
    %1147 = vmatprep.subr.bf16.mxu0 0
    %1148 = vmatpush1.bf16.msra.mxu0 0
    %1149 = vmatprep.subr.bf16.mxu0 0
    %1150 = vmatpush1.bf16.msra.mxu0 0
    %1151 = vmatprep.subr.bf16.mxu0 0
    %1152 = vmatpush1.bf16.msra.mxu0 0
    %1153 = vmatprep.mubr.bf16.mxu0 0
    %1154 = vmatmul.mubr.bf16.gmra.mrb[0].mxu0 %v1119
    %v1155 = vpop.f32.mrb[0].mxu0
    %v1156 = vadd.f32 0.0, %v1155
    %v1157 = vpop.f32.mrb[0].mxu0
    %v1158 = vadd.f32 0.0, %v1157
    %v1159 = vpop.f32.mrb[0].mxu0
    %v1160 = vpop.f32.mrb[0].mxu0
    %1161 = vdwg.mxu0
    %1162 = vmatprep.subr.bf16.mxu0 %v644
    %1163 = vmatpush1.bf16.msra.mxu0 %v643
    %1164 = vmatprep.subr.bf16.mxu0 0
    %1165 = vmatpush1.bf16.msra.mxu0 0
    %1166 = vmatprep.subr.bf16.mxu0 0
    %1167 = vmatpush1.bf16.msra.mxu0 0
    %1168 = vmatprep.subr.bf16.mxu0 0
    %1169 = vmatpush1.bf16.msra.mxu0 0
    %1170 = vmatprep.subr.bf16.mxu0 0
    %1171 = vmatpush1.bf16.msra.mxu0 0
    %1172 = vmatprep.subr.bf16.mxu0 0
    %1173 = vmatpush1.bf16.msra.mxu0 0
    %1174 = vmatprep.subr.bf16.mxu0 0
    %1175 = vmatpush1.bf16.msra.mxu0 0
    %1176 = vmatprep.subr.bf16.mxu0 0
    %1177 = vmatpush1.bf16.msra.mxu0 0
    %1178 = vmatprep.subr.bf16.mxu0 0
    %1179 = vmatpush1.bf16.msra.mxu0 0
    %1180 = vmatprep.subr.bf16.mxu0 0
    %1181 = vmatpush1.bf16.msra.mxu0 0
    %1182 = vmatprep.subr.bf16.mxu0 0
    %1183 = vmatpush1.bf16.msra.mxu0 0
    %1184 = vmatprep.subr.bf16.mxu0 0
    %1185 = vmatpush1.bf16.msra.mxu0 0
    %1186 = vmatprep.subr.bf16.mxu0 0
    %1187 = vmatpush1.bf16.msra.mxu0 0
    %1188 = vmatprep.subr.bf16.mxu0 0
    %1189 = vmatpush1.bf16.msra.mxu0 0
    %1190 = vmatprep.subr.bf16.mxu0 0
    %1191 = vmatpush1.bf16.msra.mxu0 0
    %1192 = vmatprep.subr.bf16.mxu0 0
    %1193 = vmatpush1.bf16.msra.mxu0 0
    %1194 = vmatprep.mubr.bf16.mxu0 0
    %1195 = vmatmul.mubr.bf16.gmra.mrb[0].mxu0 %v1119
    %v1196 = vpop.f32.mrb[0].mxu0
    %v1197 = vadd.f32 0.0, %v1196
    %v1198 = vpop.f32.mrb[0].mxu0
    %v1199 = vadd.f32 0.0, %v1198
    %v1200 = vpop.f32.mrb[0].mxu0
    %v1201 = vpop.f32.mrb[0].mxu0
    %1202 = vdwg.mxu0
    %v1207 = vcombine.low %v1156, %v1158
    %v1208 = vcombine.low %v1197, %v1199
    %v1210 = vunpack.c.l.s4 1966171168
    %v1211 = vunpack.c.0.s8 %v1210
    %v1212 = vlaneseq
    %v1213 = vshrl.u32 %v1212, 7
    %v1214 = vsub.s32 %v1211, %v1213
    %v1215 = vrot.slane %v1207, %v1214
    %v1217 = vunpack.c.l.s4 1966171168
    %v1218 = vunpack.c.0.s8 %v1217
    %v1219 = vlaneseq
    %v1220 = vshrl.u32 %v1219, 7
    %v1221 = vsub.s32 %v1218, %v1220
    %v1222 = vrot.slane %v1208, %v1221
    %v1223 = vcombine.low %v1215, %v1222
    %v1225 = vunpack.c.l.s4 1966171168
    %v1226 = vunpack.c.0.s8 %v1225
    %v1227 = vlaneseq
    %v1228 = vshrl.u32 %v1227, 7
    %v1229 = vsub.s32 %v1226, %v1228
    %v1230 = vrot.slane %v1223, %v1229
    %v1232 = vadd.f32 %v1115, %v1230
    %v1233 = vlaneseq
    %vm1234 = vcmp.ge.s32.totalorder %v1233, 0
    %vm1235 = vcmp.lt.s32.totalorder %v1233, 512
    %vm1236 = vmand %vm1234, %vm1235
    %1237 = vst.msk [vmem:[#allocation13] sm:$0xf] %vm1236, %v1232
    %1238 = vst.msk [vmem:[#allocation10] sm:$0x1] %vm1103, %v1080
    // Predicated region
    $region50: #{tpu_custom_call.1} parent=1 // pred_check
      _
    $region51: #{tpu_custom_call.1} parent=1 // pred_check_branch
      %1240 = sbr.rel (0) target = $region53
    $region52: #{tpu_custom_call.1} parent=1 // pred_region
      %s1242 = ssub.s32 16, 16
      %1243 = vsyncadd [#allocation6], %s1242
      %s1245 = sshll.u32 [#allocation10], 4
      %s1246 = int_to_ptr.vmem [resolvable:$true] %s1245
      %1248 = dma.vmem_to_hbm [thread:$0]  %s1246, 16, %s8, [#allocation6]
    $region53: #{tpu_custom_call.1} parent=1 // pred_fallthru
      _
    // Predicated region
    $region54: #{tpu_custom_call.1} parent=1 // pred_check
      _
    $region55: #{tpu_custom_call.1} parent=1 // pred_check_branch
      %1250 = sbr.rel (0) target = $region57
    $region56: #{tpu_custom_call.1} parent=1 // pred_region
      %s1252 = ssub.s32 16, 16
      %1253 = vsyncadd [#allocation12], %s1252
      %s1255 = sshll.u32 [#allocation11], 4
      %s1256 = int_to_ptr.vmem [resolvable:$true] %s1255
      %1258 = dma.vmem_to_hbm [thread:$0]  %s1256, 16, %s9, [#allocation12]
    $region57: #{tpu_custom_call.1} parent=1 // pred_fallthru
      _
    // Predicated region
    $region58: #{tpu_custom_call.1} parent=1 // pred_check
      _
    $region59: #{tpu_custom_call.1} parent=1 // pred_check_branch
      %1260 = sbr.rel (0) target = $region61
    $region60: #{tpu_custom_call.1} parent=1 // pred_region
      %s1262 = ssub.s32 64, 64
      %1263 = vsyncadd [#allocation12], %s1262
      %s1265 = sshll.u32 [#allocation13], 4
      %s1266 = int_to_ptr.vmem [resolvable:$true] %s1265
      %1268 = dma.vmem_to_hbm [thread:$0]  %s1266, 64, %s10, [#allocation12]
    $region61: #{tpu_custom_call.1} parent=1 // pred_fallthru
      _
    // Predicated region
    $region62: #{tpu_custom_call.1} parent=1 // pred_check
      _
    $region63: #{tpu_custom_call.1} parent=1 // pred_check_branch
      %1270 = sbr.rel (0) target = $region65
    $region64: #{tpu_custom_call.1} parent=1 // pred_region
      %1271 = dma.done [#allocation6], 16
    $region65: #{tpu_custom_call.1} parent=1 // pred_fallthru
      _
    // Predicated region
    $region66: #{tpu_custom_call.1} parent=1 // pred_check
      _
    $region67: #{tpu_custom_call.1} parent=1 // pred_check_branch
      %1273 = sbr.rel (0) target = $region69
    $region68: #{tpu_custom_call.1} parent=1 // pred_region
      %1274 = dma.done [#allocation12], 16
    $region69: #{tpu_custom_call.1} parent=1 // pred_fallthru
      _
    // Predicated region
    $region70: #{tpu_custom_call.1} parent=1 // pred_check
      _
    $region71: #{tpu_custom_call.1} parent=1 // pred_check_branch
      %1276 = sbr.rel (0) target = $region73
    $region72: #{tpu_custom_call.1} parent=1 // pred_region
      %1277 = dma.done [#allocation12], 64
    $region73: #{tpu_custom_call.1} parent=1 // pred_fallthru
      _
    %1278 = vsyncpa [#allocation5], 1
    %1279 = vsyncpa [#allocation8], 1
    %1280 = vsyncpa [#allocation6], 1
    %1281 = vsyncpa [#allocation12], 1

</llo_original>
